<compile_context>
chip_gen: v7x
topology: tpu7x:2x2x1
jax: 0.10.0
libtpu: 0.0.40
codegen_flags: <defaults>
</compile_context>

<pallas_src>
import functools

import jax
import jax.numpy as jnp
from jax.experimental import pallas as pl
from jax.experimental.pallas import tpu as pltpu


def _round_up(x, m):
    return (x + m - 1) // m * m


def _resfc_kernel(*refs, depth, compute_dtype, fuse_val):
    if fuse_val:
        (x_ref, w0_ref, b0_ref, w1_ref, b1_ref, w2_ref, b2_ref,
         wval_ref, out_ref) = refs
    else:
        (x_ref, w0_ref, b0_ref, w1_ref, b1_ref, w2_ref, b2_ref,
         out_ref) = refs

    # First layer: Linear(num_inputs, F) + ReLU. Matmul operands in
    # compute_dtype (bf16 -> MXU peak), f32 accumulation; bias/relu/residual f32.
    x = x_ref[...]
    if x.dtype != compute_dtype:
        x = x.astype(compute_dtype)
    h = jnp.dot(x, w0_ref[...], preferred_element_type=jnp.float32)
    h = jnp.maximum(h + b0_ref[...], 0.0)

    def res_layer(h, w1, b1, w2, b2):
        y = jnp.dot(h.astype(compute_dtype), w1,
                    preferred_element_type=jnp.float32)
        y = jnp.maximum(y + b1, 0.0)
        # nn.Dropout (eval mode) -> identity.
        y = jnp.dot(y.astype(compute_dtype), w2,
                    preferred_element_type=jnp.float32)
        y = jnp.maximum(y + b2, 0.0)
        return h + y

    if depth <= 8:
        # Small depth: static unroll gives the LLO scheduler full visibility.
        for d in range(depth):
            h = res_layer(h, w1_ref[d], b1_ref[d], w2_ref[d], b2_ref[d])
    else:
        # Deep stacks: fori_loop keeps vreg/VMEM pressure flat per layer.
        h = jax.lax.fori_loop(
            0, depth,
            lambda d, hh: res_layer(hh, w1_ref[d], b1_ref[d],
                                    w2_ref[d], b2_ref[d]),
            h)

    if fuse_val:
        # Fused value head: VPU multiply + XLU lane-reduce (both free slots
        # under an MXU-bound kernel); only (tile, 1) is written back.
        out_ref[...] = jnp.sum(h * wval_ref[...], axis=-1,
                               keepdims=True).astype(out_ref.dtype)
    else:
        out_ref[...] = h.astype(out_ref.dtype)


def _invariant_spec(a):
    """Full-block, grid-invariant input; single-buffered (it never changes)."""
    nd = a.ndim
    idx = lambda i: (0,) * nd
    try:
        return pl.BlockSpec(a.shape, idx, pipeline_mode=pl.Buffered(1))
    except TypeError:  # older BlockSpec signature without pipeline_mode
        return pl.BlockSpec(a.shape, idx)


def _vmem_budget():
    """Generation-aware scoped-VMEM cap."""
    try:
        cap = int(pltpu.get_tpu_info().vmem_capacity_bytes)
    except Exception:
        cap = 64 * 2**20
    if cap >= 96 * 2**20:        # v5e/v6e/v5p: 128 MiB physical -> ~100 MiB scoped
        return 100 * 2**20
    return int(cap * 0.78)       # v7x: 64 MiB/TC -> ~50 MiB, leave scratch headroom


def _pick_tile(n, tile_cap, num_inputs, f_pad, out_width, weight_bytes,
               vmem_cap, x_itemsize, out_itemsize, row_align):
    # Per-row VMEM: double-buffered x/out tiles + ~4 live (row, f_pad) f32
    # intermediates (h, y, matmul accumulator, residual temp).
    per_row = (2 * num_inputs * x_itemsize
               + 2 * out_width * out_itemsize
               + 4 * f_pad * 4)
    budget = vmem_cap - weight_bytes - (4 << 20)
    tile = tile_cap if budget <= 0 else min(tile_cap, budget // per_row)
    # Keep >= 2 grid steps when the batch allows (v7x has 2 TensorCores/chip;
    # v5e/v6e are single-TC so this is harmless there).
    half = _round_up(max(-(-n // 2), 1), row_align)
    tile = min(int(tile), half)
    tile = max(row_align, (tile // row_align) * row_align)
    return tile


def prepare_params(params, depth, compute_dtype=jnp.bfloat16):
    """One-time pad (features -> multiple of 128 lanes) + cast of the weights.

    Zero-padding is exact: padded output columns stay 0 through relu/residual
    and contribute 0 to the value head.
    """
    num_inputs, f = params["w0"].shape
    f_pad = _round_up(f, 128)

    def pad_to(a, shape):
        pads = [(0, t - s) for s, t in zip(a.shape, shape)]
        return jnp.pad(a, pads) if any(p[1] for p in pads) else a

    prepped = {
        "w0": pad_to(params["w0"], (num_inputs, f_pad)).astype(compute_dtype),
        "b0": pad_to(params["b0"], (1, f_pad)).astype(jnp.float32),
        "w1": pad_to(params["w1"], (depth, f_pad, f_pad)).astype(compute_dtype),
        "b1": pad_to(params["b1"], (depth, 1, f_pad)).astype(jnp.float32),
        "w2": pad_to(params["w2"], (depth, f_pad, f_pad)).astype(compute_dtype),
        "b2": pad_to(params["b2"], (depth, 1, f_pad)).astype(jnp.float32),
        # (1, f_pad) row used by the fused value head epilogue.
        "wval_row": pad_to(params["wval"][:, 0][None, :],
                           (1, f_pad)).astype(jnp.float32),
    }
    meta = {"num_inputs": num_inputs, "num_filts": f, "f_pad": f_pad,
            "depth": depth, "compute_dtype": compute_dtype}
    return prepped, meta


def residual_fcnet_forward(x, prepped, meta, *, return_feats=False, tile_n=512):
    """Mirrors ResidualFCNet.forward(x, return_feats=...) in eval mode."""
    n = x.shape[0]
    num_inputs = meta["num_inputs"]
    f, f_pad, depth = meta["num_filts"], meta["f_pad"], meta["depth"]
    cdt = meta["compute_dtype"]
    x_itemsize = jnp.dtype(cdt).itemsize
    row_align = max(8, (8 * 4) // x_itemsize)     # 8 for f32, 16 for bf16

    # Pre-cast x (halves the x-tile DMA); pad batch only to sublane alignment.
    x_p = x.astype(cdt)
    n_pad = _round_up(n, row_align)
    if n_pad != n:
        x_p = jnp.pad(x_p, ((0, n_pad - n), (0, 0)))

    out_width = f_pad if return_feats else 1
    weights = (prepped["w0"], prepped["b0"], prepped["w1"], prepped["b1"],
               prepped["w2"], prepped["b2"])
    if not return_feats:
        weights = weights + (prepped["wval_row"],)

    # Single-buffered weight VMEM + generation-aware cap -> batch tile size.
    weight_bytes = sum(int(a.size) * a.dtype.itemsize for a in weights)
    vmem_cap = _vmem_budget()
    tile = _pick_tile(n, tile_n, num_inputs, f_pad, out_width, weight_bytes,
                      vmem_cap, x_itemsize, 4, row_align)
    grid = pl.cdiv(n_pad, tile)                    # boundary blocks are masked

    kernel = functools.partial(_resfc_kernel, depth=depth, compute_dtype=cdt,
                               fuse_val=not return_feats)

    in_specs = [pl.BlockSpec((tile, num_inputs), lambda i: (i, 0))]
    in_specs += [_invariant_spec(a) for a in weights]

    flops = 2 * n_pad * (num_inputs * f_pad + 2 * depth * f_pad * f_pad)
    if not return_feats:
        flops += 2 * n_pad * f_pad
    bytes_accessed = (int(x_p.size) * x_itemsize + weight_bytes
                      + n_pad * out_width * 4)

    out = pl.pallas_call(
        kernel,
        out_shape=jax.ShapeDtypeStruct((n_pad, out_width), jnp.float32),
        grid_spec=pltpu.PrefetchScalarGridSpec(
            num_scalar_prefetch=0,
            grid=(grid,),
            in_specs=in_specs,
            out_specs=pl.BlockSpec((tile, out_width), lambda i: (i, 0)),
        ),
        compiler_params=pltpu.CompilerParams(
            dimension_semantics=("parallel",),
            vmem_limit_bytes=int(vmem_cap)),
        cost_estimate=pl.CostEstimate(
            flops=int(flops), transcendentals=0,
            bytes_accessed=int(bytes_accessed)),
    )(x_p, *weights)

    if return_feats:
        return out[:n, :f]
    return out[:n, 0]


def init_params(key, num_inputs, num_filts, depth):
    ks = jax.random.split(key, 7)
    s = 0.1
    return {
        "w0": s * jax.random.normal(ks[0], (num_inputs, num_filts), jnp.float32),
        "b0": s * jax.random.normal(ks[1], (1, num_filts), jnp.float32),
        "w1": s * jax.random.normal(ks[2], (depth, num_filts, num_filts), jnp.float32),
        "b1": s * jax.random.normal(ks[3], (depth, 1, num_filts), jnp.float32),
        "w2": s * jax.random.normal(ks[4], (depth, num_filts, num_filts), jnp.float32),
        "b2": s * jax.random.normal(ks[5], (depth, 1, num_filts), jnp.float32),
        "wval": s * jax.random.normal(ks[6], (num_filts, 1), jnp.float32),
    }


def _reference(x, params, depth):
    """Pure-JAX f32 reference matching the PyTorch module (eval mode)."""
    h = jax.nn.relu(x @ params["w0"] + params["b0"])
    for d in range(depth):
        y = jax.nn.relu(h @ params["w1"][d] + params["b1"][d])
        y = jax.nn.relu(y @ params["w2"][d] + params["b2"][d])
        h = h + y
    return (h @ params["wval"])[:, 0], h


if __name__ == "__main__":
    num_inputs, num_filts, depth = 4, 32, 4
    batch = 20   # intentionally not a multiple of 8 to exercise batch padding

    key = jax.random.PRNGKey(0)
    kx, kp = jax.random.split(key)
    x = jax.random.normal(kx, (batch, num_inputs), jnp.float32)
    params = init_params(kp, num_inputs, num_filts, depth)

    # Weight pad/cast is done once here, off the per-forward path.
    prepped, meta = prepare_params(params, depth=depth)

    loc_emb = residual_fcnet_forward(x, prepped, meta, return_feats=True)
    out = residual_fcnet_forward(x, prepped, meta)
    jax.block_until_ready((out, loc_emb))

    ref_out, ref_emb = _reference(x, params, depth)
    assert out.shape == (batch,)
    assert loc_emb.shape == (batch, num_filts)
    # bf16 matmul operands with f32 accumulation -> loosened tolerances.
    assert jnp.allclose(loc_emb, ref_emb, atol=5e-2, rtol=5e-2), \
        float(jnp.max(jnp.abs(loc_emb - ref_emb)))
    assert jnp.allclose(out, ref_out, atol=5e-2, rtol=5e-2), \
        float(jnp.max(jnp.abs(out - ref_out)))

    print("KERNEL_OK")
</pallas_src>

<mosaic_0001>
module attributes {stable_mosaic.version = 11 : i64} {
  func.func @_resfc_kernel(%arg0: i32, %arg1: memref<16x4xbf16, #tpu.memory_space<vmem>>, %arg2: memref<4x128xbf16, #tpu.memory_space<vmem>>, %arg3: memref<1x128xf32, #tpu.memory_space<vmem>>, %arg4: memref<4x128x128xbf16, #tpu.memory_space<vmem>>, %arg5: memref<4x1x128xf32, #tpu.memory_space<vmem>>, %arg6: memref<4x128x128xbf16, #tpu.memory_space<vmem>>, %arg7: memref<4x1x128xf32, #tpu.memory_space<vmem>>, %arg8: memref<16x128xf32, #tpu.memory_space<vmem>>) attributes {dimension_semantics = [#tpu.dimension_semantics<parallel>], iteration_bounds = array<i64: 2>, scalar_prefetch = 0 : i64, scratch_operands = 0 : i64, tpu.core_type = #tpu.core_type<tc>, window_params = [{transform_indices = @transform_0, window_bounds = array<i64: 16, 4>}, {pipeline_mode = #tpu.pipeline_mode<synchronous>, transform_indices = @transform_1, window_bounds = array<i64: 4, 128>}, {pipeline_mode = #tpu.pipeline_mode<synchronous>, transform_indices = @transform_2, window_bounds = array<i64: 1, 128>}, {pipeline_mode = #tpu.pipeline_mode<synchronous>, transform_indices = @transform_3, window_bounds = array<i64: 4, 128, 128>}, {pipeline_mode = #tpu.pipeline_mode<synchronous>, transform_indices = @transform_4, window_bounds = array<i64: 4, 1, 128>}, {pipeline_mode = #tpu.pipeline_mode<synchronous>, transform_indices = @transform_5, window_bounds = array<i64: 4, 128, 128>}, {pipeline_mode = #tpu.pipeline_mode<synchronous>, transform_indices = @transform_6, window_bounds = array<i64: 4, 1, 128>}, {transform_indices = @transform_7, window_bounds = array<i64: 16, 128>}]} {
    %c0 = arith.constant 0 : index
    %c0_0 = arith.constant 0 : index
    %0 = vector.load %arg1[%c0, %c0_0] : memref<16x4xbf16, #tpu.memory_space<vmem>>, vector<16x4xbf16>
    %c0_1 = arith.constant 0 : index
    %c0_2 = arith.constant 0 : index
    %1 = vector.load %arg2[%c0_1, %c0_2] : memref<4x128xbf16, #tpu.memory_space<vmem>>, vector<4x128xbf16>
    %cst = arith.constant dense<0.000000e+00> : vector<16x128xf32>
    %2 = tpu.matmul %0, %1, %cst {dimension_numbers = #tpu.dot_dimension_numbers<[1], [0], [0], [1], [0, 0, 1, 1], [], []>} : vector<16x4xbf16>, vector<4x128xbf16>, vector<16x128xf32> -> vector<16x128xf32>
    %c0_3 = arith.constant 0 : index
    %c0_4 = arith.constant 0 : index
    %3 = vector.load %arg3[%c0_3, %c0_4] : memref<1x128xf32, #tpu.memory_space<vmem>>, vector<1x128xf32>
    %4 = vector.broadcast %3 : vector<1x128xf32> to vector<16x128xf32>
    %5 = arith.addf %2, %4 : vector<16x128xf32>
    %cst_5 = arith.constant 0.000000e+00 : f32
    %6 = vector.broadcast %cst_5 : f32 to vector<16x128xf32>
    %7 = arith.maximumf %5, %6 : vector<16x128xf32>
    %c0_6 = arith.constant 0 : index
    %c0_7 = arith.constant 0 : index
    %c0_8 = arith.constant 0 : index
    %8 = vector.load %arg4[%c0_6, %c0_7, %c0_8] : memref<4x128x128xbf16, #tpu.memory_space<vmem>>, vector<1x128x128xbf16>
    %9 = vector.shape_cast %8 : vector<1x128x128xbf16> to vector<128x128xbf16>
    %c0_9 = arith.constant 0 : index
    %c0_10 = arith.constant 0 : index
    %c0_11 = arith.constant 0 : index
    %10 = vector.load %arg5[%c0_9, %c0_10, %c0_11] : memref<4x1x128xf32, #tpu.memory_space<vmem>>, vector<1x1x128xf32>
    %11 = vector.shape_cast %10 : vector<1x1x128xf32> to vector<1x128xf32>
    %c0_12 = arith.constant 0 : index
    %c0_13 = arith.constant 0 : index
    %c0_14 = arith.constant 0 : index
    %12 = vector.load %arg6[%c0_12, %c0_13, %c0_14] : memref<4x128x128xbf16, #tpu.memory_space<vmem>>, vector<1x128x128xbf16>
    %13 = vector.shape_cast %12 : vector<1x128x128xbf16> to vector<128x128xbf16>
    %c0_15 = arith.constant 0 : index
    %c0_16 = arith.constant 0 : index
    %c0_17 = arith.constant 0 : index
    %14 = vector.load %arg7[%c0_15, %c0_16, %c0_17] : memref<4x1x128xf32, #tpu.memory_space<vmem>>, vector<1x1x128xf32>
    %15 = vector.shape_cast %14 : vector<1x1x128xf32> to vector<1x128xf32>
    %16 = arith.truncf %7 : vector<16x128xf32> to vector<16x128xbf16>
    %cst_18 = arith.constant dense<0.000000e+00> : vector<16x128xf32>
    %17 = tpu.matmul %16, %9, %cst_18 {dimension_numbers = #tpu.dot_dimension_numbers<[1], [0], [0], [1], [0, 0, 1, 1], [], []>} : vector<16x128xbf16>, vector<128x128xbf16>, vector<16x128xf32> -> vector<16x128xf32>
    %18 = vector.broadcast %11 : vector<1x128xf32> to vector<16x128xf32>
    %19 = arith.addf %17, %18 : vector<16x128xf32>
    %cst_19 = arith.constant 0.000000e+00 : f32
    %20 = vector.broadcast %cst_19 : f32 to vector<16x128xf32>
    %21 = arith.maximumf %19, %20 : vector<16x128xf32>
    %22 = arith.truncf %21 : vector<16x128xf32> to vector<16x128xbf16>
    %cst_20 = arith.constant dense<0.000000e+00> : vector<16x128xf32>
    %23 = tpu.matmul %22, %13, %cst_20 {dimension_numbers = #tpu.dot_dimension_numbers<[1], [0], [0], [1], [0, 0, 1, 1], [], []>} : vector<16x128xbf16>, vector<128x128xbf16>, vector<16x128xf32> -> vector<16x128xf32>
    %24 = vector.broadcast %15 : vector<1x128xf32> to vector<16x128xf32>
    %25 = arith.addf %23, %24 : vector<16x128xf32>
    %cst_21 = arith.constant 0.000000e+00 : f32
    %26 = vector.broadcast %cst_21 : f32 to vector<16x128xf32>
    %27 = arith.maximumf %25, %26 : vector<16x128xf32>
    %28 = arith.addf %7, %27 : vector<16x128xf32>
    %c1 = arith.constant 1 : index
    %c0_22 = arith.constant 0 : index
    %c0_23 = arith.constant 0 : index
    %29 = vector.load %arg4[%c1, %c0_22, %c0_23] : memref<4x128x128xbf16, #tpu.memory_space<vmem>>, vector<1x128x128xbf16>
    %30 = vector.shape_cast %29 : vector<1x128x128xbf16> to vector<128x128xbf16>
    %c1_24 = arith.constant 1 : index
    %c0_25 = arith.constant 0 : index
    %c0_26 = arith.constant 0 : index
    %31 = vector.load %arg5[%c1_24, %c0_25, %c0_26] : memref<4x1x128xf32, #tpu.memory_space<vmem>>, vector<1x1x128xf32>
    %32 = vector.shape_cast %31 : vector<1x1x128xf32> to vector<1x128xf32>
    %c1_27 = arith.constant 1 : index
    %c0_28 = arith.constant 0 : index
    %c0_29 = arith.constant 0 : index
    %33 = vector.load %arg6[%c1_27, %c0_28, %c0_29] : memref<4x128x128xbf16, #tpu.memory_space<vmem>>, vector<1x128x128xbf16>
    %34 = vector.shape_cast %33 : vector<1x128x128xbf16> to vector<128x128xbf16>
    %c1_30 = arith.constant 1 : index
    %c0_31 = arith.constant 0 : index
    %c0_32 = arith.constant 0 : index
    %35 = vector.load %arg7[%c1_30, %c0_31, %c0_32] : memref<4x1x128xf32, #tpu.memory_space<vmem>>, vector<1x1x128xf32>
    %36 = vector.shape_cast %35 : vector<1x1x128xf32> to vector<1x128xf32>
    %37 = arith.truncf %28 : vector<16x128xf32> to vector<16x128xbf16>
    %cst_33 = arith.constant dense<0.000000e+00> : vector<16x128xf32>
    %38 = tpu.matmul %37, %30, %cst_33 {dimension_numbers = #tpu.dot_dimension_numbers<[1], [0], [0], [1], [0, 0, 1, 1], [], []>} : vector<16x128xbf16>, vector<128x128xbf16>, vector<16x128xf32> -> vector<16x128xf32>
    %39 = vector.broadcast %32 : vector<1x128xf32> to vector<16x128xf32>
    %40 = arith.addf %38, %39 : vector<16x128xf32>
    %cst_34 = arith.constant 0.000000e+00 : f32
    %41 = vector.broadcast %cst_34 : f32 to vector<16x128xf32>
    %42 = arith.maximumf %40, %41 : vector<16x128xf32>
    %43 = arith.truncf %42 : vector<16x128xf32> to vector<16x128xbf16>
    %cst_35 = arith.constant dense<0.000000e+00> : vector<16x128xf32>
    %44 = tpu.matmul %43, %34, %cst_35 {dimension_numbers = #tpu.dot_dimension_numbers<[1], [0], [0], [1], [0, 0, 1, 1], [], []>} : vector<16x128xbf16>, vector<128x128xbf16>, vector<16x128xf32> -> vector<16x128xf32>
    %45 = vector.broadcast %36 : vector<1x128xf32> to vector<16x128xf32>
    %46 = arith.addf %44, %45 : vector<16x128xf32>
    %cst_36 = arith.constant 0.000000e+00 : f32
    %47 = vector.broadcast %cst_36 : f32 to vector<16x128xf32>
    %48 = arith.maximumf %46, %47 : vector<16x128xf32>
    %49 = arith.addf %28, %48 : vector<16x128xf32>
    %c2 = arith.constant 2 : index
    %c0_37 = arith.constant 0 : index
    %c0_38 = arith.constant 0 : index
    %50 = vector.load %arg4[%c2, %c0_37, %c0_38] : memref<4x128x128xbf16, #tpu.memory_space<vmem>>, vector<1x128x128xbf16>
    %51 = vector.shape_cast %50 : vector<1x128x128xbf16> to vector<128x128xbf16>
    %c2_39 = arith.constant 2 : index
    %c0_40 = arith.constant 0 : index
    %c0_41 = arith.constant 0 : index
    %52 = vector.load %arg5[%c2_39, %c0_40, %c0_41] : memref<4x1x128xf32, #tpu.memory_space<vmem>>, vector<1x1x128xf32>
    %53 = vector.shape_cast %52 : vector<1x1x128xf32> to vector<1x128xf32>
    %c2_42 = arith.constant 2 : index
    %c0_43 = arith.constant 0 : index
    %c0_44 = arith.constant 0 : index
    %54 = vector.load %arg6[%c2_42, %c0_43, %c0_44] : memref<4x128x128xbf16, #tpu.memory_space<vmem>>, vector<1x128x128xbf16>
    %55 = vector.shape_cast %54 : vector<1x128x128xbf16> to vector<128x128xbf16>
    %c2_45 = arith.constant 2 : index
    %c0_46 = arith.constant 0 : index
    %c0_47 = arith.constant 0 : index
    %56 = vector.load %arg7[%c2_45, %c0_46, %c0_47] : memref<4x1x128xf32, #tpu.memory_space<vmem>>, vector<1x1x128xf32>
    %57 = vector.shape_cast %56 : vector<1x1x128xf32> to vector<1x128xf32>
    %58 = arith.truncf %49 : vector<16x128xf32> to vector<16x128xbf16>
    %cst_48 = arith.constant dense<0.000000e+00> : vector<16x128xf32>
    %59 = tpu.matmul %58, %51, %cst_48 {dimension_numbers = #tpu.dot_dimension_numbers<[1], [0], [0], [1], [0, 0, 1, 1], [], []>} : vector<16x128xbf16>, vector<128x128xbf16>, vector<16x128xf32> -> vector<16x128xf32>
    %60 = vector.broadcast %53 : vector<1x128xf32> to vector<16x128xf32>
    %61 = arith.addf %59, %60 : vector<16x128xf32>
    %cst_49 = arith.constant 0.000000e+00 : f32
    %62 = vector.broadcast %cst_49 : f32 to vector<16x128xf32>
    %63 = arith.maximumf %61, %62 : vector<16x128xf32>
    %64 = arith.truncf %63 : vector<16x128xf32> to vector<16x128xbf16>
    %cst_50 = arith.constant dense<0.000000e+00> : vector<16x128xf32>
    %65 = tpu.matmul %64, %55, %cst_50 {dimension_numbers = #tpu.dot_dimension_numbers<[1], [0], [0], [1], [0, 0, 1, 1], [], []>} : vector<16x128xbf16>, vector<128x128xbf16>, vector<16x128xf32> -> vector<16x128xf32>
    %66 = vector.broadcast %57 : vector<1x128xf32> to vector<16x128xf32>
    %67 = arith.addf %65, %66 : vector<16x128xf32>
    %cst_51 = arith.constant 0.000000e+00 : f32
    %68 = vector.broadcast %cst_51 : f32 to vector<16x128xf32>
    %69 = arith.maximumf %67, %68 : vector<16x128xf32>
    %70 = arith.addf %49, %69 : vector<16x128xf32>
    %c3 = arith.constant 3 : index
    %c0_52 = arith.constant 0 : index
    %c0_53 = arith.constant 0 : index
    %71 = vector.load %arg4[%c3, %c0_52, %c0_53] : memref<4x128x128xbf16, #tpu.memory_space<vmem>>, vector<1x128x128xbf16>
    %72 = vector.shape_cast %71 : vector<1x128x128xbf16> to vector<128x128xbf16>
    %c3_54 = arith.constant 3 : index
    %c0_55 = arith.constant 0 : index
    %c0_56 = arith.constant 0 : index
    %73 = vector.load %arg5[%c3_54, %c0_55, %c0_56] : memref<4x1x128xf32, #tpu.memory_space<vmem>>, vector<1x1x128xf32>
    %74 = vector.shape_cast %73 : vector<1x1x128xf32> to vector<1x128xf32>
    %c3_57 = arith.constant 3 : index
    %c0_58 = arith.constant 0 : index
    %c0_59 = arith.constant 0 : index
    %75 = vector.load %arg6[%c3_57, %c0_58, %c0_59] : memref<4x128x128xbf16, #tpu.memory_space<vmem>>, vector<1x128x128xbf16>
    %76 = vector.shape_cast %75 : vector<1x128x128xbf16> to vector<128x128xbf16>
    %c3_60 = arith.constant 3 : index
    %c0_61 = arith.constant 0 : index
    %c0_62 = arith.constant 0 : index
    %77 = vector.load %arg7[%c3_60, %c0_61, %c0_62] : memref<4x1x128xf32, #tpu.memory_space<vmem>>, vector<1x1x128xf32>
    %78 = vector.shape_cast %77 : vector<1x1x128xf32> to vector<1x128xf32>
    %79 = arith.truncf %70 : vector<16x128xf32> to vector<16x128xbf16>
    %cst_63 = arith.constant dense<0.000000e+00> : vector<16x128xf32>
    %80 = tpu.matmul %79, %72, %cst_63 {dimension_numbers = #tpu.dot_dimension_numbers<[1], [0], [0], [1], [0, 0, 1, 1], [], []>} : vector<16x128xbf16>, vector<128x128xbf16>, vector<16x128xf32> -> vector<16x128xf32>
    %81 = vector.broadcast %74 : vector<1x128xf32> to vector<16x128xf32>
    %82 = arith.addf %80, %81 : vector<16x128xf32>
    %cst_64 = arith.constant 0.000000e+00 : f32
    %83 = vector.broadcast %cst_64 : f32 to vector<16x128xf32>
    %84 = arith.maximumf %82, %83 : vector<16x128xf32>
    %85 = arith.truncf %84 : vector<16x128xf32> to vector<16x128xbf16>
    %cst_65 = arith.constant dense<0.000000e+00> : vector<16x128xf32>
    %86 = tpu.matmul %85, %76, %cst_65 {dimension_numbers = #tpu.dot_dimension_numbers<[1], [0], [0], [1], [0, 0, 1, 1], [], []>} : vector<16x128xbf16>, vector<128x128xbf16>, vector<16x128xf32> -> vector<16x128xf32>
    %87 = vector.broadcast %78 : vector<1x128xf32> to vector<16x128xf32>
    %88 = arith.addf %86, %87 : vector<16x128xf32>
    %cst_66 = arith.constant 0.000000e+00 : f32
    %89 = vector.broadcast %cst_66 : f32 to vector<16x128xf32>
    %90 = arith.maximumf %88, %89 : vector<16x128xf32>
    %91 = arith.addf %70, %90 : vector<16x128xf32>
    %c0_67 = arith.constant 0 : index
    %c0_68 = arith.constant 0 : index
    %92 = vector.load %arg8[%c0_67, %c0_68] : memref<16x128xf32, #tpu.memory_space<vmem>>, vector<16x128xf32>
    tpu.vector_store %arg8[%c0_67, %c0_68], %91 {strides = array<i32>} : memref<16x128xf32, #tpu.memory_space<vmem>>, vector<16x128xf32>,
    return
  }
  func.func @transform_0(%arg0: i32) -> (i32, i32) {
    %c0_i32 = arith.constant 0 : i32
    %c0_i32_0 = arith.constant 0 : i32
    return %arg0, %c0_i32 : i32, i32
  }
  func.func @transform_1(%arg0: i32) -> (i32, i32) {
    %c0_i32 = arith.constant 0 : i32
    %c0_i32_0 = arith.constant 0 : i32
    %c0_i32_1 = arith.constant 0 : i32
    return %c0_i32, %c0_i32_0 : i32, i32
  }
  func.func @transform_2(%arg0: i32) -> (i32, i32) {
    %c0_i32 = arith.constant 0 : i32
    %c0_i32_0 = arith.constant 0 : i32
    %c0_i32_1 = arith.constant 0 : i32
    return %c0_i32, %c0_i32_0 : i32, i32
  }
  func.func @transform_3(%arg0: i32) -> (i32, i32, i32) {
    %c0_i32 = arith.constant 0 : i32
    %c0_i32_0 = arith.constant 0 : i32
    %c0_i32_1 = arith.constant 0 : i32
    %c0_i32_2 = arith.constant 0 : i32
    return %c0_i32, %c0_i32_0, %c0_i32_1 : i32, i32, i32
  }
  func.func @transform_4(%arg0: i32) -> (i32, i32, i32) {
    %c0_i32 = arith.constant 0 : i32
    %c0_i32_0 = arith.constant 0 : i32
    %c0_i32_1 = arith.constant 0 : i32
    %c0_i32_2 = arith.constant 0 : i32
    return %c0_i32, %c0_i32_0, %c0_i32_1 : i32, i32, i32
  }
  func.func @transform_5(%arg0: i32) -> (i32, i32, i32) {
    %c0_i32 = arith.constant 0 : i32
    %c0_i32_0 = arith.constant 0 : i32
    %c0_i32_1 = arith.constant 0 : i32
    %c0_i32_2 = arith.constant 0 : i32
    return %c0_i32, %c0_i32_0, %c0_i32_1 : i32, i32, i32
  }
  func.func @transform_6(%arg0: i32) -> (i32, i32, i32) {
    %c0_i32 = arith.constant 0 : i32
    %c0_i32_0 = arith.constant 0 : i32
    %c0_i32_1 = arith.constant 0 : i32
    %c0_i32_2 = arith.constant 0 : i32
    return %c0_i32, %c0_i32_0, %c0_i32_1 : i32, i32, i32
  }
  func.func @transform_7(%arg0: i32) -> (i32, i32) {
    %c0_i32 = arith.constant 0 : i32
    %c0_i32_0 = arith.constant 0 : i32
    return %arg0, %c0_i32 : i32, i32
  }
}

</mosaic_0001>

<llo_original>
// kernel: tpu_custom_call.1
$region0: #{tpu_custom_call.1}
  #allocation0 [shape = 'u32[]', space=smem, size = 0x4, offset = 0x4, fixed_abs, tag = 'smem constant byte address 0x4 - core index']
  #allocation1 [shape = 'u32[144,128]{1,0:T(1,128)}', space=vmem, size = 0x12000, scoped, tag = 'internal scratch']
  %s0 = inlined_call_operand.vmem [shape: bf16[32,4], index: 0, kind: input, shape index: {}]
  %s1 = inlined_call_operand.vmem [shape: bf16[4,128], index: 1, kind: input, shape index: {}]
  %s2 = inlined_call_operand.vmem [shape: f32[1,128], index: 2, kind: input, shape index: {}]
  %s3 = inlined_call_operand.hbm [shape: bf16[4,128,128], index: 3, kind: input, shape index: {}]
  %s4 = inlined_call_operand.vmem [shape: f32[4,1,128], index: 4, kind: input, shape index: {}]
  %s5 = inlined_call_operand.hbm [shape: bf16[4,128,128], index: 5, kind: input, shape index: {}]
  %s6 = inlined_call_operand.vmem [shape: f32[4,1,128], index: 6, kind: input, shape index: {}]
  %s7 = inlined_call_operand.hbm [shape: f32[32,128], index: 7, kind: output, shape index: {}]
  %s8 = sld [smem:[#allocation0]]
  $region69: #{tpu_custom_call.1} parent=0
    _
  %s10 = ssub.s32 1, %s8
  %s11 = scalar_select 0, %s10, %s8
  $region1: #{tpu_custom_call.1} parent=0
    #allocation2 [shape = 'u8[131072]{0}', space=vmem, size = 0x20000, scoped, tag = 'input window, operand 3, single buffered']
    #allocation3 [shape = 's32[2]{0}', space=sflag, size = 0x8, scoped, tag = 'scoped memory for tpu_custom_call.1']
    #allocation4 [shape = 's32[2]{0}', space=sflag, size = 0x8, scoped, tag = 'scoped memory for tpu_custom_call.1']
    #allocation5 [shape = 'u8[131072]{0}', space=vmem, size = 0x20000, scoped, tag = 'input window, operand 5, single buffered']
    #allocation6 [shape = 's32[1]{0}', space=sflag, size = 0x4, scoped, tag = 'scoped memory for tpu_custom_call.1']
    #allocation7 [shape = 'u8[16384]{0}', space=vmem, size = 0x4000, scoped, tag = 'output window, operand 0']
    %12 = vsyncpa [#allocation3], 0
    %13 = vsyncpa [#allocation6], 0
    %14 = vsyncpa [#allocation4], 0
    %s15 = scalar_lea.sflag [#allocation4], 1
    %16 = vsyncpa %s15, 0
    loop: start=0, step=1, limit=4
    $region2: #{tpu_custom_call.1} parent=1 // loop_pre_header
      _
    $region3: #{tpu_custom_call.1} parent=1 // loop_header
      %s18 = sphi 0, %s22
      %p19 = scmp.ge.s32.totalorder %s18, 4
      %s28 = sphi 0, %s30
      %s31 = sphi 0, %s28
      %s32 = sphi 0, %s31
      %s48 = sphi 0, %s32
      %s52 = sphi 0, %s52
      %s54 = sphi 0, %s52
      %s55 = sphi 0, %s54
      %s69 = sphi 0, %s55
      %s73 = sphi 0, %s73
      %s75 = sphi 0, %s73
      %s76 = sphi 0, %s75
      %s90 = sphi 0, %s76
      %s94 = sphi 0, %s94
      %s96 = sphi 0, %s94
      %s97 = sphi 0, %s96
      %s111 = sphi 0, %s97
      %s115 = sphi 0, %s115
      %s117 = sphi 0, %s115
      %s118 = sphi 0, %s117
      %s132 = sphi 0, %s118
      %s136 = sphi 0, %s136
      %s138 = sphi 0, %s136
      %s139 = sphi 0, %s138
      %s153 = sphi 0, %s139
      %s157 = sphi 0, %s157
      %s159 = sphi 0, %s157
      %s160 = sphi 0, %s159
      %s174 = sphi 0, %s160
      %s180 = sphi 0, %s182
      %s183 = sphi 0, %s180
      %s184 = sphi 0, %s183
      %s200 = sphi 0, %s184
    $region4: #{tpu_custom_call.1} parent=1 // loop_header_branch
      %21 = sbr.rel (%p19) target = $region8
    $region5: #{tpu_custom_call.1} parent=1 // loop_body
      %s23 = ssub.s32 %s18, 1
      %s24 = ssub.s32 %s18, 2
      %s25 = sadd.s32 %s18, 1
      %s26 = ssub.s32 %s18, %s25
      %p27 = scmp.eq.s32.totalorder %s26, 0
      %s29 = sadd.s32 %s28, 1
      %s30 = scalar_select %p27, %s28, %s29
      %p33 = pneg %p27
      %p34 = scmp.eq.s32.totalorder %s18, 1
      %p35 = por %p33, %p34
      %p36 = scmp.ne.s32.totalorder %s28, %s31
      %p37 = scmp.eq.s32.totalorder %s18, 0
      %p38 = por %p36, %p37
      %p39 = scmp.ne.s32.totalorder %s28, %s31
      %p40 = scmp.eq.s32.totalorder %s23, 1
      %p41 = por %p39, %p40
      %p42 = scmp.ne.s32.totalorder %s31, %s32
      %p43 = scmp.eq.s32.totalorder %s23, 0
      %p44 = por %p42, %p43
      %p45 = scmp.ne.s32.totalorder %s31, %s32
      %p46 = scmp.eq.s32.totalorder %s24, 1
      %p47 = por %p45, %p46
      %p49 = scmp.ne.s32.totalorder %s32, %s48
      %p50 = scmp.eq.s32.totalorder %s24, 0
      %p51 = por %p49, %p50
      %s53 = sadd.s32 %s52, 1
      %p56 = scmp.eq.s32.totalorder %s18, 1
      %p57 = scmp.ne.s32.totalorder %s52, %s54
      %p58 = scmp.eq.s32.totalorder %s18, 0
      %p59 = por %p57, %p58
      %p60 = scmp.ne.s32.totalorder %s52, %s54
      %p61 = scmp.eq.s32.totalorder %s23, 1
      %p62 = por %p60, %p61
      %p63 = scmp.ne.s32.totalorder %s54, %s55
      %p64 = scmp.eq.s32.totalorder %s23, 0
      %p65 = por %p63, %p64
      %p66 = scmp.ne.s32.totalorder %s54, %s55
      %p67 = scmp.eq.s32.totalorder %s24, 1
      %p68 = por %p66, %p67
      %p70 = scmp.ne.s32.totalorder %s55, %s69
      %p71 = scmp.eq.s32.totalorder %s24, 0
      %p72 = por %p70, %p71
      %s74 = sadd.s32 %s73, 1
      %p77 = scmp.eq.s32.totalorder %s18, 1
      %p78 = scmp.ne.s32.totalorder %s73, %s75
      %p79 = scmp.eq.s32.totalorder %s18, 0
      %p80 = por %p78, %p79
      %p81 = scmp.ne.s32.totalorder %s73, %s75
      %p82 = scmp.eq.s32.totalorder %s23, 1
      %p83 = por %p81, %p82
      %p84 = scmp.ne.s32.totalorder %s75, %s76
      %p85 = scmp.eq.s32.totalorder %s23, 0
      %p86 = por %p84, %p85
      %p87 = scmp.ne.s32.totalorder %s75, %s76
      %p88 = scmp.eq.s32.totalorder %s24, 1
      %p89 = por %p87, %p88
      %p91 = scmp.ne.s32.totalorder %s76, %s90
      %p92 = scmp.eq.s32.totalorder %s24, 0
      %p93 = por %p91, %p92
      %s95 = sadd.s32 %s94, 1
      %p98 = scmp.eq.s32.totalorder %s18, 1
      %p99 = scmp.ne.s32.totalorder %s94, %s96
      %p100 = scmp.eq.s32.totalorder %s18, 0
      %p101 = por %p99, %p100
      %p102 = scmp.ne.s32.totalorder %s94, %s96
      %p103 = scmp.eq.s32.totalorder %s23, 1
      %p104 = por %p102, %p103
      %p105 = scmp.ne.s32.totalorder %s96, %s97
      %p106 = scmp.eq.s32.totalorder %s23, 0
      %p107 = por %p105, %p106
      %p108 = scmp.ne.s32.totalorder %s96, %s97
      %p109 = scmp.eq.s32.totalorder %s24, 1
      %p110 = por %p108, %p109
      %p112 = scmp.ne.s32.totalorder %s97, %s111
      %p113 = scmp.eq.s32.totalorder %s24, 0
      %p114 = por %p112, %p113
      %s116 = sadd.s32 %s115, 1
      %p119 = scmp.eq.s32.totalorder %s18, 1
      %p120 = scmp.ne.s32.totalorder %s115, %s117
      %p121 = scmp.eq.s32.totalorder %s18, 0
      %p122 = por %p120, %p121
      %p123 = scmp.ne.s32.totalorder %s115, %s117
      %p124 = scmp.eq.s32.totalorder %s23, 1
      %p125 = por %p123, %p124
      %p126 = scmp.ne.s32.totalorder %s117, %s118
      %p127 = scmp.eq.s32.totalorder %s23, 0
      %p128 = por %p126, %p127
      %p129 = scmp.ne.s32.totalorder %s117, %s118
      %p130 = scmp.eq.s32.totalorder %s24, 1
      %p131 = por %p129, %p130
      %p133 = scmp.ne.s32.totalorder %s118, %s132
      %p134 = scmp.eq.s32.totalorder %s24, 0
      %p135 = por %p133, %p134
      %s137 = sadd.s32 %s136, 1
      %p140 = scmp.eq.s32.totalorder %s18, 1
      %p141 = scmp.ne.s32.totalorder %s136, %s138
      %p142 = scmp.eq.s32.totalorder %s18, 0
      %p143 = por %p141, %p142
      %p144 = scmp.ne.s32.totalorder %s136, %s138
      %p145 = scmp.eq.s32.totalorder %s23, 1
      %p146 = por %p144, %p145
      %p147 = scmp.ne.s32.totalorder %s138, %s139
      %p148 = scmp.eq.s32.totalorder %s23, 0
      %p149 = por %p147, %p148
      %p150 = scmp.ne.s32.totalorder %s138, %s139
      %p151 = scmp.eq.s32.totalorder %s24, 1
      %p152 = por %p150, %p151
      %p154 = scmp.ne.s32.totalorder %s139, %s153
      %p155 = scmp.eq.s32.totalorder %s24, 0
      %p156 = por %p154, %p155
      %s158 = sadd.s32 %s157, 1
      %p161 = scmp.eq.s32.totalorder %s18, 1
      %p162 = scmp.ne.s32.totalorder %s157, %s159
      %p163 = scmp.eq.s32.totalorder %s18, 0
      %p164 = por %p162, %p163
      %p165 = scmp.ne.s32.totalorder %s157, %s159
      %p166 = scmp.eq.s32.totalorder %s23, 1
      %p167 = por %p165, %p166
      %p168 = scmp.ne.s32.totalorder %s159, %s160
      %p169 = scmp.eq.s32.totalorder %s23, 0
      %p170 = por %p168, %p169
      %p171 = scmp.ne.s32.totalorder %s159, %s160
      %p172 = scmp.eq.s32.totalorder %s24, 1
      %p173 = por %p171, %p172
      %p175 = scmp.ne.s32.totalorder %s160, %s174
      %p176 = scmp.eq.s32.totalorder %s24, 0
      %p177 = por %p175, %p176
      %s178 = ssub.s32 %s18, %s25
      %p179 = scmp.eq.s32.totalorder %s178, 0
      %s181 = sadd.s32 %s180, 1
      %s182 = scalar_select %p179, %s180, %s181
      %p185 = pneg %p179
      %p186 = scmp.eq.s32.totalorder %s18, 1
      %p187 = por %p185, %p186
      %p188 = scmp.ne.s32.totalorder %s180, %s183
      %p189 = scmp.eq.s32.totalorder %s18, 0
      %p190 = por %p188, %p189
      %p191 = scmp.ne.s32.totalorder %s180, %s183
      %p192 = scmp.eq.s32.totalorder %s23, 1
      %p193 = por %p191, %p192
      %p194 = scmp.ne.s32.totalorder %s183, %s184
      %p195 = scmp.eq.s32.totalorder %s23, 0
      %p196 = por %p194, %p195
      %p197 = scmp.ne.s32.totalorder %s183, %s184
      %p198 = scmp.eq.s32.totalorder %s24, 1
      %p199 = por %p197, %p198
      %p201 = scmp.ne.s32.totalorder %s184, %s200
      %p202 = scmp.eq.s32.totalorder %s24, 0
      %p203 = por %p201, %p202
      %p204 = scmp.le.s32.totalorder 1, %s18
      %p205 = scmp.lt.s32.totalorder %s18, 3
      %p206 = pnand %p204, %p205
      %p207 = pneg %p206
      // Predicated region
      $region9: #{tpu_custom_call.1} parent=5 // pred_check
        _
      $region10: #{tpu_custom_call.1} parent=5 // pred_check_branch
        %209 = sbr.rel (%p206) target = $region12
      $region11: #{tpu_custom_call.1} parent=5 // pred_region
        %s210 = ssub.s32 %s18, 1
        // Predicated region
        $region13: #{tpu_custom_call.1} parent=11 // pred_check
          %p211 = pneg %p65
        $region14: #{tpu_custom_call.1} parent=11 // pred_check_branch
          %213 = sbr.rel (%p211) target = $region16
        $region15: #{tpu_custom_call.1} parent=11 // pred_region
          _
        $region16: #{tpu_custom_call.1} parent=11 // pred_fallthru
          _
        // Predicated region
        $region17: #{tpu_custom_call.1} parent=11 // pred_check
          %p214 = pneg %p86
        $region18: #{tpu_custom_call.1} parent=11 // pred_check_branch
          %216 = sbr.rel (%p214) target = $region20
        $region19: #{tpu_custom_call.1} parent=11 // pred_region
          _
        $region20: #{tpu_custom_call.1} parent=11 // pred_fallthru
          _
        // Predicated region
        $region21: #{tpu_custom_call.1} parent=11 // pred_check
          %p217 = pneg %p107
        $region22: #{tpu_custom_call.1} parent=11 // pred_check_branch
          %219 = sbr.rel (%p217) target = $region24
        $region23: #{tpu_custom_call.1} parent=11 // pred_region
          %s221 = ssub.s32 4096, 4096
          %222 = vsyncadd [#allocation3], %s221
          %s223 = sshll.u32 [#allocation2], 4
          %s224 = int_to_ptr.vmem [resolvable:$true] %s223
          %229 = dma.hbm_to_vmem [thread:$0]  %s3, 4096, %s224, [#allocation3], 64, 64, 4
        $region24: #{tpu_custom_call.1} parent=11 // pred_fallthru
          _
        // Predicated region
        $region25: #{tpu_custom_call.1} parent=11 // pred_check
          %p230 = pneg %p128
        $region26: #{tpu_custom_call.1} parent=11 // pred_check_branch
          %232 = sbr.rel (%p230) target = $region28
        $region27: #{tpu_custom_call.1} parent=11 // pred_region
          _
        $region28: #{tpu_custom_call.1} parent=11 // pred_fallthru
          _
        // Predicated region
        $region29: #{tpu_custom_call.1} parent=11 // pred_check
          %p233 = pneg %p149
        $region30: #{tpu_custom_call.1} parent=11 // pred_check_branch
          %235 = sbr.rel (%p233) target = $region32
        $region31: #{tpu_custom_call.1} parent=11 // pred_region
          %s237 = ssub.s32 4096, 4096
          %238 = vsyncadd [#allocation6], %s237
          %s239 = sshll.u32 [#allocation5], 4
          %s240 = int_to_ptr.vmem [resolvable:$true] %s239
          %245 = dma.hbm_to_vmem [thread:$0]  %s5, 4096, %s240, [#allocation6], 64, 64, 4
        $region32: #{tpu_custom_call.1} parent=11 // pred_fallthru
          _
        // Predicated region
        $region33: #{tpu_custom_call.1} parent=11 // pred_check
          %p246 = pneg %p170
        $region34: #{tpu_custom_call.1} parent=11 // pred_check_branch
          %248 = sbr.rel (%p246) target = $region36
        $region35: #{tpu_custom_call.1} parent=11 // pred_region
          _
        $region36: #{tpu_custom_call.1} parent=11 // pred_fallthru
          _
      $region12: #{tpu_custom_call.1} parent=5 // pred_fallthru
        _
      %p249 = scmp.lt.s32.totalorder %s18, 2
      // Predicated region
      $region37: #{tpu_custom_call.1} parent=5 // pred_check
        %p250 = pneg %p249
      $region38: #{tpu_custom_call.1} parent=5 // pred_check_branch
        %252 = sbr.rel (%p250) target = $region40
      $region39: #{tpu_custom_call.1} parent=5 // pred_region
        // Predicated region
        $region41: #{tpu_custom_call.1} parent=39 // pred_check
          %p253 = pneg %p38
        $region42: #{tpu_custom_call.1} parent=39 // pred_check_branch
          %255 = sbr.rel (%p253) target = $region44
        $region43: #{tpu_custom_call.1} parent=39 // pred_region
          %s256 = smul.u32 2, %s18
          %p257 = scmp.lt.s32.totalorder %s256, 3
          %s258 = scalar_select %p257, %s256, 3
          %s259 = smul.addr %s258, 4
          %s260 = scalar_lea.vmem %s0, %s259
          %s261 = smul.u32 2, %s18
        $region44: #{tpu_custom_call.1} parent=39 // pred_fallthru
          _
      $region40: #{tpu_custom_call.1} parent=5 // pred_fallthru
        _
      %p262 = scmp.le.s32.totalorder 1, %s18
      %p263 = scmp.lt.s32.totalorder %s18, 3
      %p264 = pnand %p262, %p263
      %p265 = pneg %p264
      // Predicated region
      $region45: #{tpu_custom_call.1} parent=5 // pred_check
        _
      $region46: #{tpu_custom_call.1} parent=5 // pred_check_branch
        %267 = sbr.rel (%p264) target = $region48
      $region47: #{tpu_custom_call.1} parent=5 // pred_region
        %s268 = ssub.s32 %s18, 1
        // Predicated region
        $region49: #{tpu_custom_call.1} parent=47 // pred_check
          %p269 = pneg %p107
        $region50: #{tpu_custom_call.1} parent=47 // pred_check_branch
          %271 = sbr.rel (%p269) target = $region52
        $region51: #{tpu_custom_call.1} parent=47 // pred_region
          %272 = dma.done [#allocation3], 4096
        $region52: #{tpu_custom_call.1} parent=47 // pred_fallthru
          _
        // Predicated region
        $region53: #{tpu_custom_call.1} parent=47 // pred_check
          %p273 = pneg %p149
        $region54: #{tpu_custom_call.1} parent=47 // pred_check_branch
          %275 = sbr.rel (%p273) target = $region56
        $region55: #{tpu_custom_call.1} parent=47 // pred_region
          %276 = dma.done [#allocation6], 4096
        $region56: #{tpu_custom_call.1} parent=47 // pred_fallthru
          _
        %s277 = smul.u32 2, %s23
        %p278 = scmp.lt.s32.totalorder %s277, 3
        %s279 = scalar_select %p278, %s277, 3
        %s280 = smul.addr %s279, 4
        %s281 = scalar_lea.vmem %s0, %s280
        %p282 = pneg %p44
        %p283 = pneg %p41
        %p284 = pneg %p65
        %p285 = pneg %p62
        %p286 = pneg %p86
        %p287 = pneg %p83
        %p288 = pneg %p107
        %p289 = pneg %p104
        %p290 = pneg %p128
        %p291 = pneg %p125
        %p292 = pneg %p149
        %p293 = pneg %p146
        %p294 = pneg %p170
        %p295 = pneg %p167
        %p296 = pneg %p196
        %p297 = pneg %p193
        %s298 = sand.u32 %s183, 1
        %s299 = scalar_lea.sflag [#allocation4], %s298
        %s300 = sand.u32 %s183, 1
        %s301 = smul.addr %s300, 16
        %s302 = scalar_lea.vmem [#allocation7], %s301
        %s303 = smul.u32 2, %s23
        %p304 = scmp.lt.s32.totalorder %s303, 3
        %s305 = scalar_select %p304, %s303, 3
        %s306 = smul.addr %s305, 4
        %s307 = scalar_lea.vmem %s0, %s306
        %s308 = smul.u32 2, %s23
        %s309 = smul.u32 2, %s23
        %v311 = vld [vmem:[%s307] sm:$0xf]
        %v312 = vld [vmem:[%s307 + $0x4] sm:$0xf]
        %v313 = vld [vmem:[%s1] sm:$0x3]
        %v314 = vld [vmem:[%s2] sm:$0x1]
        %v316 = vlaneseq
        %v317 = vshrl.u32 %v316, 7
        %v318 = vsub.s32 0, %v317
        %v319 = vrot.slane %v314, %v318
        %v323 = vunpack.c.l.b16 %v311
        %v324 = vunpack.c.l.b16 %v312
        %v325 = vpack.c.b16 %v324, %v323
        %vm326 = vcmask 31744
        %v328 = vsel %vm326, %v325, 0
        %vm330 = vcmask 1041408
        %v332 = vsel %vm330, %v313, 0
        %334 = vmatprep.subr.bf16.mxu0 0
        %335 = vmatpush1.bf16.msra.mxu0 %v332
        %336 = vmatprep.subr.bf16.mxu0 0
        %337 = vmatpush1.bf16.msra.mxu0 0
        %338 = vmatprep.subr.bf16.mxu0 0
        %339 = vmatpush1.bf16.msra.mxu0 0
        %340 = vmatprep.subr.bf16.mxu0 0
        %341 = vmatpush1.bf16.msra.mxu0 0
        %342 = vmatprep.subr.bf16.mxu0 0
        %343 = vmatpush1.bf16.msra.mxu0 0
        %344 = vmatprep.subr.bf16.mxu0 0
        %345 = vmatpush1.bf16.msra.mxu0 0
        %346 = vmatprep.subr.bf16.mxu0 0
        %347 = vmatpush1.bf16.msra.mxu0 0
        %348 = vmatprep.subr.bf16.mxu0 0
        %349 = vmatpush1.bf16.msra.mxu0 0
        %350 = vmatprep.subr.bf16.mxu0 0
        %351 = vmatpush1.bf16.msra.mxu0 0
        %352 = vmatprep.subr.bf16.mxu0 0
        %353 = vmatpush1.bf16.msra.mxu0 0
        %354 = vmatprep.subr.bf16.mxu0 0
        %355 = vmatpush1.bf16.msra.mxu0 0
        %356 = vmatprep.subr.bf16.mxu0 0
        %357 = vmatpush1.bf16.msra.mxu0 0
        %358 = vmatprep.subr.bf16.mxu0 0
        %359 = vmatpush1.bf16.msra.mxu0 0
        %360 = vmatprep.subr.bf16.mxu0 0
        %361 = vmatpush1.bf16.msra.mxu0 0
        %362 = vmatprep.subr.bf16.mxu0 0
        %363 = vmatpush1.bf16.msra.mxu0 0
        %364 = vmatprep.subr.bf16.mxu0 0
        %365 = vmatpush1.bf16.msra.mxu0 0
        %366 = vmatprep.mubr.bf16.mxu0 0
        %367 = vmatmul.mubr.bf16.gmra.mrb[0].mxu0 %v328
        %v368 = vpop.f32.mrb[0].mxu0
        %v369 = vadd.f32 %v319, %v368
        %v370 = vpop.f32.mrb[0].mxu0
        %v371 = vpop.f32.mrb[0].mxu0
        %v372 = vadd.f32 %v319, %v371
        %v373 = vpop.f32.mrb[0].mxu0
        %374 = vdwg.mxu0
        %v375 = vmax.f32 %v369, 0.0
        %v376 = vmax.f32 %v372, 0.0
        %v377 = vld [vmem:[#allocation2] sm:$0xf]
        %v378 = vld [vmem:[#allocation2 + $0x4] sm:$0xf]
        %v379 = vld [vmem:[#allocation2 + $0x8] sm:$0xf]
        %v380 = vld [vmem:[#allocation2 + $0xc] sm:$0xf]
        %v381 = vld [vmem:[#allocation2 + $0x10] sm:$0xf]
        %v382 = vld [vmem:[#allocation2 + $0x14] sm:$0xf]
        %v383 = vld [vmem:[#allocation2 + $0x18] sm:$0xf]
        %v384 = vld [vmem:[#allocation2 + $0x1c] sm:$0xf]
        %v385 = vld [vmem:[#allocation2 + $0x20] sm:$0xf]
        %v386 = vld [vmem:[#allocation2 + $0x24] sm:$0xf]
        %v387 = vld [vmem:[#allocation2 + $0x28] sm:$0xf]
        %v388 = vld [vmem:[#allocation2 + $0x2c] sm:$0xf]
        %v389 = vld [vmem:[#allocation2 + $0x30] sm:$0xf]
        %v390 = vld [vmem:[#allocation2 + $0x34] sm:$0xf]
        %v391 = vld [vmem:[#allocation2 + $0x38] sm:$0xf]
        %v392 = vld [vmem:[#allocation2 + $0x3c] sm:$0xf]
        %v393 = vld [vmem:[%s4] sm:$0x1]
        %v394 = vld [vmem:[#allocation5] sm:$0xf]
        %v395 = vld [vmem:[#allocation5 + $0x4] sm:$0xf]
        %v396 = vld [vmem:[#allocation5 + $0x8] sm:$0xf]
        %v397 = vld [vmem:[#allocation5 + $0xc] sm:$0xf]
        %v398 = vld [vmem:[#allocation5 + $0x10] sm:$0xf]
        %v399 = vld [vmem:[#allocation5 + $0x14] sm:$0xf]
        %v400 = vld [vmem:[#allocation5 + $0x18] sm:$0xf]
        %v401 = vld [vmem:[#allocation5 + $0x1c] sm:$0xf]
        %v402 = vld [vmem:[#allocation5 + $0x20] sm:$0xf]
        %v403 = vld [vmem:[#allocation5 + $0x24] sm:$0xf]
        %v404 = vld [vmem:[#allocation5 + $0x28] sm:$0xf]
        %v405 = vld [vmem:[#allocation5 + $0x2c] sm:$0xf]
        %v406 = vld [vmem:[#allocation5 + $0x30] sm:$0xf]
        %v407 = vld [vmem:[#allocation5 + $0x34] sm:$0xf]
        %v408 = vld [vmem:[#allocation5 + $0x38] sm:$0xf]
        %v409 = vld [vmem:[#allocation5 + $0x3c] sm:$0xf]
        %v410 = vld [vmem:[%s6] sm:$0x1]
        %v411 = vpack.c.bf16 %v376, %v375
        %v413 = vlaneseq
        %v414 = vshrl.u32 %v413, 7
        %v415 = vsub.s32 0, %v414
        %v416 = vrot.slane %v393, %v415
        %v434 = vunpack.c.l.b16 %v377
        %v435 = vunpack.c.l.b16 %v378
        %v436 = vunpack.c.l.b16 %v379
        %v437 = vunpack.c.l.b16 %v380
        %v438 = vunpack.c.l.b16 %v381
        %v439 = vunpack.c.l.b16 %v382
        %v440 = vunpack.c.l.b16 %v383
        %v441 = vunpack.c.l.b16 %v384
        %v442 = vunpack.c.l.b16 %v385
        %v443 = vunpack.c.l.b16 %v386
        %v444 = vunpack.c.l.b16 %v387
        %v445 = vunpack.c.l.b16 %v388
        %v446 = vunpack.c.l.b16 %v389
        %v447 = vunpack.c.l.b16 %v390
        %v448 = vunpack.c.l.b16 %v391
        %v449 = vunpack.c.l.b16 %v392
        %v450 = vpack.c.b16 %v435, %v434
        %v451 = vpack.c.b16 %v437, %v436
        %v452 = vpack.c.b16 %v439, %v438
        %v453 = vpack.c.b16 %v441, %v440
        %v454 = vpack.c.b16 %v443, %v442
        %v455 = vpack.c.b16 %v445, %v444
        %v456 = vpack.c.b16 %v447, %v446
        %v457 = vpack.c.b16 %v449, %v448
        %466 = vmatprep.subr.bf16.mxu0 0
        %467 = vmatpush1.bf16.msra.mxu0 %v450
        %468 = vmatprep.subr.bf16.mxu0 0
        %469 = vmatpush1.bf16.msra.mxu0 %v451
        %470 = vmatprep.subr.bf16.mxu0 0
        %471 = vmatpush1.bf16.msra.mxu0 %v452
        %472 = vmatprep.subr.bf16.mxu0 0
        %473 = vmatpush1.bf16.msra.mxu0 %v453
        %474 = vmatprep.subr.bf16.mxu0 0
        %475 = vmatpush1.bf16.msra.mxu0 %v454
        %476 = vmatprep.subr.bf16.mxu0 0
        %477 = vmatpush1.bf16.msra.mxu0 %v455
        %478 = vmatprep.subr.bf16.mxu0 0
        %479 = vmatpush1.bf16.msra.mxu0 %v456
        %480 = vmatprep.subr.bf16.mxu0 0
        %481 = vmatpush1.bf16.msra.mxu0 %v457
        %482 = vmatprep.subr.bf16.mxu0 0
        %483 = vmatpush1.bf16.msra.mxu0 0
        %484 = vmatprep.subr.bf16.mxu0 0
        %485 = vmatpush1.bf16.msra.mxu0 0
        %486 = vmatprep.subr.bf16.mxu0 0
        %487 = vmatpush1.bf16.msra.mxu0 0
        %488 = vmatprep.subr.bf16.mxu0 0
        %489 = vmatpush1.bf16.msra.mxu0 0
        %490 = vmatprep.subr.bf16.mxu0 0
        %491 = vmatpush1.bf16.msra.mxu0 0
        %492 = vmatprep.subr.bf16.mxu0 0
        %493 = vmatpush1.bf16.msra.mxu0 0
        %494 = vmatprep.subr.bf16.mxu0 0
        %495 = vmatpush1.bf16.msra.mxu0 0
        %496 = vmatprep.subr.bf16.mxu0 0
        %497 = vmatpush1.bf16.msra.mxu0 0
        %498 = vmatprep.mubr.bf16.mxu0 0
        %499 = vmatmul.mubr.bf16.gmra.mrb[0].mxu0 %v411
        %v500 = vpop.f32.mrb[0].mxu0
        %v501 = vadd.f32 %v416, %v500
        %v502 = vpop.f32.mrb[0].mxu0
        %v503 = vpop.f32.mrb[0].mxu0
        %v504 = vadd.f32 %v416, %v503
        %v505 = vpop.f32.mrb[0].mxu0
        %506 = vdwg.mxu0
        %v507 = vmax.f32 %v501, 0.0
        %v508 = vmax.f32 %v504, 0.0
        %v509 = vpack.c.bf16 %v508, %v507
        %v511 = vlaneseq
        %v512 = vshrl.u32 %v511, 7
        %v513 = vsub.s32 0, %v512
        %v514 = vrot.slane %v410, %v513
        %v532 = vunpack.c.l.b16 %v394
        %v533 = vunpack.c.l.b16 %v395
        %v534 = vunpack.c.l.b16 %v396
        %v535 = vunpack.c.l.b16 %v397
        %v536 = vunpack.c.l.b16 %v398
        %v537 = vunpack.c.l.b16 %v399
        %v538 = vunpack.c.l.b16 %v400
        %v539 = vunpack.c.l.b16 %v401
        %v540 = vunpack.c.l.b16 %v402
        %v541 = vunpack.c.l.b16 %v403
        %v542 = vunpack.c.l.b16 %v404
        %v543 = vunpack.c.l.b16 %v405
        %v544 = vunpack.c.l.b16 %v406
        %v545 = vunpack.c.l.b16 %v407
        %v546 = vunpack.c.l.b16 %v408
        %v547 = vunpack.c.l.b16 %v409
        %v548 = vpack.c.b16 %v533, %v532
        %v549 = vpack.c.b16 %v535, %v534
        %v550 = vpack.c.b16 %v537, %v536
        %v551 = vpack.c.b16 %v539, %v538
        %v552 = vpack.c.b16 %v541, %v540
        %v553 = vpack.c.b16 %v543, %v542
        %v554 = vpack.c.b16 %v545, %v544
        %v555 = vpack.c.b16 %v547, %v546
        %564 = vmatprep.subr.bf16.mxu0 0
        %565 = vmatpush1.bf16.msra.mxu0 %v548
        %566 = vmatprep.subr.bf16.mxu0 0
        %567 = vmatpush1.bf16.msra.mxu0 %v549
        %568 = vmatprep.subr.bf16.mxu0 0
        %569 = vmatpush1.bf16.msra.mxu0 %v550
        %570 = vmatprep.subr.bf16.mxu0 0
        %571 = vmatpush1.bf16.msra.mxu0 %v551
        %572 = vmatprep.subr.bf16.mxu0 0
        %573 = vmatpush1.bf16.msra.mxu0 %v552
        %574 = vmatprep.subr.bf16.mxu0 0
        %575 = vmatpush1.bf16.msra.mxu0 %v553
        %576 = vmatprep.subr.bf16.mxu0 0
        %577 = vmatpush1.bf16.msra.mxu0 %v554
        %578 = vmatprep.subr.bf16.mxu0 0
        %579 = vmatpush1.bf16.msra.mxu0 %v555
        %580 = vmatprep.subr.bf16.mxu0 0
        %581 = vmatpush1.bf16.msra.mxu0 0
        %582 = vmatprep.subr.bf16.mxu0 0
        %583 = vmatpush1.bf16.msra.mxu0 0
        %584 = vmatprep.subr.bf16.mxu0 0
        %585 = vmatpush1.bf16.msra.mxu0 0
        %586 = vmatprep.subr.bf16.mxu0 0
        %587 = vmatpush1.bf16.msra.mxu0 0
        %588 = vmatprep.subr.bf16.mxu0 0
        %589 = vmatpush1.bf16.msra.mxu0 0
        %590 = vmatprep.subr.bf16.mxu0 0
        %591 = vmatpush1.bf16.msra.mxu0 0
        %592 = vmatprep.subr.bf16.mxu0 0
        %593 = vmatpush1.bf16.msra.mxu0 0
        %594 = vmatprep.subr.bf16.mxu0 0
        %595 = vmatpush1.bf16.msra.mxu0 0
        %596 = vmatprep.mubr.bf16.mxu0 0
        %597 = vmatmul.mubr.bf16.gmra.mrb[0].mxu0 %v509
        %v598 = vpop.f32.mrb[0].mxu0
        %v599 = vadd.f32 %v514, %v598
        %v600 = vpop.f32.mrb[0].mxu0
        %v601 = vpop.f32.mrb[0].mxu0
        %v602 = vadd.f32 %v514, %v601
        %v603 = vpop.f32.mrb[0].mxu0
        %604 = vdwg.mxu0
        %v605 = vmax.f32 %v599, 0.0
        %v606 = vmax.f32 %v602, 0.0
        %v607 = vadd.f32 %v375, %v605
        %v608 = vadd.f32 %v376, %v606
        %s609 = scalar_lea.vmem [#allocation2], 64
        %v610 = vld [vmem:[%s609] sm:$0xf]
        %v611 = vld [vmem:[%s609 + $0x4] sm:$0xf]
        %v612 = vld [vmem:[%s609 + $0x8] sm:$0xf]
        %v613 = vld [vmem:[%s609 + $0xc] sm:$0xf]
        %v614 = vld [vmem:[%s609 + $0x10] sm:$0xf]
        %v615 = vld [vmem:[%s609 + $0x14] sm:$0xf]
        %v616 = vld [vmem:[%s609 + $0x18] sm:$0xf]
        %v617 = vld [vmem:[%s609 + $0x1c] sm:$0xf]
        %v618 = vld [vmem:[%s609 + $0x20] sm:$0xf]
        %v619 = vld [vmem:[%s609 + $0x24] sm:$0xf]
        %v620 = vld [vmem:[%s609 + $0x28] sm:$0xf]
        %v621 = vld [vmem:[%s609 + $0x2c] sm:$0xf]
        %v622 = vld [vmem:[%s609 + $0x30] sm:$0xf]
        %v623 = vld [vmem:[%s609 + $0x34] sm:$0xf]
        %v624 = vld [vmem:[%s609 + $0x38] sm:$0xf]
        %v625 = vld [vmem:[%s609 + $0x3c] sm:$0xf]
        %s626 = scalar_lea.vmem %s4, 1
        %v627 = vld [vmem:[%s626] sm:$0x1]
        %s628 = scalar_lea.vmem [#allocation5], 64
        %v629 = vld [vmem:[%s628] sm:$0xf]
        %v630 = vld [vmem:[%s628 + $0x4] sm:$0xf]
        %v631 = vld [vmem:[%s628 + $0x8] sm:$0xf]
        %v632 = vld [vmem:[%s628 + $0xc] sm:$0xf]
        %v633 = vld [vmem:[%s628 + $0x10] sm:$0xf]
        %v634 = vld [vmem:[%s628 + $0x14] sm:$0xf]
        %v635 = vld [vmem:[%s628 + $0x18] sm:$0xf]
        %v636 = vld [vmem:[%s628 + $0x1c] sm:$0xf]
        %v637 = vld [vmem:[%s628 + $0x20] sm:$0xf]
        %v638 = vld [vmem:[%s628 + $0x24] sm:$0xf]
        %v639 = vld [vmem:[%s628 + $0x28] sm:$0xf]
        %v640 = vld [vmem:[%s628 + $0x2c] sm:$0xf]
        %v641 = vld [vmem:[%s628 + $0x30] sm:$0xf]
        %v642 = vld [vmem:[%s628 + $0x34] sm:$0xf]
        %v643 = vld [vmem:[%s628 + $0x38] sm:$0xf]
        %v644 = vld [vmem:[%s628 + $0x3c] sm:$0xf]
        %s645 = scalar_lea.vmem %s6, 1
        %v646 = vld [vmem:[%s645] sm:$0x1]
        %v647 = vpack.c.bf16 %v608, %v607
        %v649 = vlaneseq
        %v650 = vshrl.u32 %v649, 7
        %v651 = vsub.s32 0, %v650
        %v652 = vrot.slane %v627, %v651
        %v670 = vunpack.c.l.b16 %v610
        %v671 = vunpack.c.l.b16 %v611
        %v672 = vunpack.c.l.b16 %v612
        %v673 = vunpack.c.l.b16 %v613
        %v674 = vunpack.c.l.b16 %v614
        %v675 = vunpack.c.l.b16 %v615
        %v676 = vunpack.c.l.b16 %v616
        %v677 = vunpack.c.l.b16 %v617
        %v678 = vunpack.c.l.b16 %v618
        %v679 = vunpack.c.l.b16 %v619
        %v680 = vunpack.c.l.b16 %v620
        %v681 = vunpack.c.l.b16 %v621
        %v682 = vunpack.c.l.b16 %v622
        %v683 = vunpack.c.l.b16 %v623
        %v684 = vunpack.c.l.b16 %v624
        %v685 = vunpack.c.l.b16 %v625
        %v686 = vpack.c.b16 %v671, %v670
        %v687 = vpack.c.b16 %v673, %v672
        %v688 = vpack.c.b16 %v675, %v674
        %v689 = vpack.c.b16 %v677, %v676
        %v690 = vpack.c.b16 %v679, %v678
        %v691 = vpack.c.b16 %v681, %v680
        %v692 = vpack.c.b16 %v683, %v682
        %v693 = vpack.c.b16 %v685, %v684
        %702 = vmatprep.subr.bf16.mxu0 0
        %703 = vmatpush1.bf16.msra.mxu0 %v686
        %704 = vmatprep.subr.bf16.mxu0 0
        %705 = vmatpush1.bf16.msra.mxu0 %v687
        %706 = vmatprep.subr.bf16.mxu0 0
        %707 = vmatpush1.bf16.msra.mxu0 %v688
        %708 = vmatprep.subr.bf16.mxu0 0
        %709 = vmatpush1.bf16.msra.mxu0 %v689
        %710 = vmatprep.subr.bf16.mxu0 0
        %711 = vmatpush1.bf16.msra.mxu0 %v690
        %712 = vmatprep.subr.bf16.mxu0 0
        %713 = vmatpush1.bf16.msra.mxu0 %v691
        %714 = vmatprep.subr.bf16.mxu0 0
        %715 = vmatpush1.bf16.msra.mxu0 %v692
        %716 = vmatprep.subr.bf16.mxu0 0
        %717 = vmatpush1.bf16.msra.mxu0 %v693
        %718 = vmatprep.subr.bf16.mxu0 0
        %719 = vmatpush1.bf16.msra.mxu0 0
        %720 = vmatprep.subr.bf16.mxu0 0
        %721 = vmatpush1.bf16.msra.mxu0 0
        %722 = vmatprep.subr.bf16.mxu0 0
        %723 = vmatpush1.bf16.msra.mxu0 0
        %724 = vmatprep.subr.bf16.mxu0 0
        %725 = vmatpush1.bf16.msra.mxu0 0
        %726 = vmatprep.subr.bf16.mxu0 0
        %727 = vmatpush1.bf16.msra.mxu0 0
        %728 = vmatprep.subr.bf16.mxu0 0
        %729 = vmatpush1.bf16.msra.mxu0 0
        %730 = vmatprep.subr.bf16.mxu0 0
        %731 = vmatpush1.bf16.msra.mxu0 0
        %732 = vmatprep.subr.bf16.mxu0 0
        %733 = vmatpush1.bf16.msra.mxu0 0
        %734 = vmatprep.mubr.bf16.mxu0 0
        %735 = vmatmul.mubr.bf16.gmra.mrb[0].mxu0 %v647
        %v736 = vpop.f32.mrb[0].mxu0
        %v737 = vadd.f32 %v652, %v736
        %v738 = vpop.f32.mrb[0].mxu0
        %v739 = vpop.f32.mrb[0].mxu0
        %v740 = vadd.f32 %v652, %v739
        %v741 = vpop.f32.mrb[0].mxu0
        %742 = vdwg.mxu0
        %v743 = vmax.f32 %v737, 0.0
        %v744 = vmax.f32 %v740, 0.0
        %v745 = vpack.c.bf16 %v744, %v743
        %v747 = vlaneseq
        %v748 = vshrl.u32 %v747, 7
        %v749 = vsub.s32 0, %v748
        %v750 = vrot.slane %v646, %v749
        %v768 = vunpack.c.l.b16 %v629
        %v769 = vunpack.c.l.b16 %v630
        %v770 = vunpack.c.l.b16 %v631
        %v771 = vunpack.c.l.b16 %v632
        %v772 = vunpack.c.l.b16 %v633
        %v773 = vunpack.c.l.b16 %v634
        %v774 = vunpack.c.l.b16 %v635
        %v775 = vunpack.c.l.b16 %v636
        %v776 = vunpack.c.l.b16 %v637
        %v777 = vunpack.c.l.b16 %v638
        %v778 = vunpack.c.l.b16 %v639
        %v779 = vunpack.c.l.b16 %v640
        %v780 = vunpack.c.l.b16 %v641
        %v781 = vunpack.c.l.b16 %v642
        %v782 = vunpack.c.l.b16 %v643
        %v783 = vunpack.c.l.b16 %v644
        %v784 = vpack.c.b16 %v769, %v768
        %v785 = vpack.c.b16 %v771, %v770
        %v786 = vpack.c.b16 %v773, %v772
        %v787 = vpack.c.b16 %v775, %v774
        %v788 = vpack.c.b16 %v777, %v776
        %v789 = vpack.c.b16 %v779, %v778
        %v790 = vpack.c.b16 %v781, %v780
        %v791 = vpack.c.b16 %v783, %v782
        %800 = vmatprep.subr.bf16.mxu0 0
        %801 = vmatpush1.bf16.msra.mxu0 %v784
        %802 = vmatprep.subr.bf16.mxu0 0
        %803 = vmatpush1.bf16.msra.mxu0 %v785
        %804 = vmatprep.subr.bf16.mxu0 0
        %805 = vmatpush1.bf16.msra.mxu0 %v786
        %806 = vmatprep.subr.bf16.mxu0 0
        %807 = vmatpush1.bf16.msra.mxu0 %v787
        %808 = vmatprep.subr.bf16.mxu0 0
        %809 = vmatpush1.bf16.msra.mxu0 %v788
        %810 = vmatprep.subr.bf16.mxu0 0
        %811 = vmatpush1.bf16.msra.mxu0 %v789
        %812 = vmatprep.subr.bf16.mxu0 0
        %813 = vmatpush1.bf16.msra.mxu0 %v790
        %814 = vmatprep.subr.bf16.mxu0 0
        %815 = vmatpush1.bf16.msra.mxu0 %v791
        %816 = vmatprep.subr.bf16.mxu0 0
        %817 = vmatpush1.bf16.msra.mxu0 0
        %818 = vmatprep.subr.bf16.mxu0 0
        %819 = vmatpush1.bf16.msra.mxu0 0
        %820 = vmatprep.subr.bf16.mxu0 0
        %821 = vmatpush1.bf16.msra.mxu0 0
        %822 = vmatprep.subr.bf16.mxu0 0
        %823 = vmatpush1.bf16.msra.mxu0 0
        %824 = vmatprep.subr.bf16.mxu0 0
        %825 = vmatpush1.bf16.msra.mxu0 0
        %826 = vmatprep.subr.bf16.mxu0 0
        %827 = vmatpush1.bf16.msra.mxu0 0
        %828 = vmatprep.subr.bf16.mxu0 0
        %829 = vmatpush1.bf16.msra.mxu0 0
        %830 = vmatprep.subr.bf16.mxu0 0
        %831 = vmatpush1.bf16.msra.mxu0 0
        %832 = vmatprep.mubr.bf16.mxu0 0
        %833 = vmatmul.mubr.bf16.gmra.mrb[0].mxu0 %v745
        %v834 = vpop.f32.mrb[0].mxu0
        %v835 = vadd.f32 %v750, %v834
        %v836 = vpop.f32.mrb[0].mxu0
        %v837 = vpop.f32.mrb[0].mxu0
        %v838 = vadd.f32 %v750, %v837
        %v839 = vpop.f32.mrb[0].mxu0
        %840 = vdwg.mxu0
        %v841 = vmax.f32 %v835, 0.0
        %v842 = vmax.f32 %v838, 0.0
        %v843 = vadd.f32 %v607, %v841
        %v844 = vadd.f32 %v608, %v842
        %s845 = scalar_lea.vmem [#allocation2], 128
        %v846 = vld [vmem:[%s845] sm:$0xf]
        %v847 = vld [vmem:[%s845 + $0x4] sm:$0xf]
        %v848 = vld [vmem:[%s845 + $0x8] sm:$0xf]
        %v849 = vld [vmem:[%s845 + $0xc] sm:$0xf]
        %v850 = vld [vmem:[%s845 + $0x10] sm:$0xf]
        %v851 = vld [vmem:[%s845 + $0x14] sm:$0xf]
        %v852 = vld [vmem:[%s845 + $0x18] sm:$0xf]
        %v853 = vld [vmem:[%s845 + $0x1c] sm:$0xf]
        %v854 = vld [vmem:[%s845 + $0x20] sm:$0xf]
        %v855 = vld [vmem:[%s845 + $0x24] sm:$0xf]
        %v856 = vld [vmem:[%s845 + $0x28] sm:$0xf]
        %v857 = vld [vmem:[%s845 + $0x2c] sm:$0xf]
        %v858 = vld [vmem:[%s845 + $0x30] sm:$0xf]
        %v859 = vld [vmem:[%s845 + $0x34] sm:$0xf]
        %v860 = vld [vmem:[%s845 + $0x38] sm:$0xf]
        %v861 = vld [vmem:[%s845 + $0x3c] sm:$0xf]
        %s862 = scalar_lea.vmem %s4, 2
        %v863 = vld [vmem:[%s862] sm:$0x1]
        %s864 = scalar_lea.vmem [#allocation5], 128
        %v865 = vld [vmem:[%s864] sm:$0xf]
        %v866 = vld [vmem:[%s864 + $0x4] sm:$0xf]
        %v867 = vld [vmem:[%s864 + $0x8] sm:$0xf]
        %v868 = vld [vmem:[%s864 + $0xc] sm:$0xf]
        %v869 = vld [vmem:[%s864 + $0x10] sm:$0xf]
        %v870 = vld [vmem:[%s864 + $0x14] sm:$0xf]
        %v871 = vld [vmem:[%s864 + $0x18] sm:$0xf]
        %v872 = vld [vmem:[%s864 + $0x1c] sm:$0xf]
        %v873 = vld [vmem:[%s864 + $0x20] sm:$0xf]
        %v874 = vld [vmem:[%s864 + $0x24] sm:$0xf]
        %v875 = vld [vmem:[%s864 + $0x28] sm:$0xf]
        %v876 = vld [vmem:[%s864 + $0x2c] sm:$0xf]
        %v877 = vld [vmem:[%s864 + $0x30] sm:$0xf]
        %v878 = vld [vmem:[%s864 + $0x34] sm:$0xf]
        %v879 = vld [vmem:[%s864 + $0x38] sm:$0xf]
        %v880 = vld [vmem:[%s864 + $0x3c] sm:$0xf]
        %s881 = scalar_lea.vmem %s6, 2
        %v882 = vld [vmem:[%s881] sm:$0x1]
        %v883 = vpack.c.bf16 %v844, %v843
        %v885 = vlaneseq
        %v886 = vshrl.u32 %v885, 7
        %v887 = vsub.s32 0, %v886
        %v888 = vrot.slane %v863, %v887
        %v906 = vunpack.c.l.b16 %v846
        %v907 = vunpack.c.l.b16 %v847
        %v908 = vunpack.c.l.b16 %v848
        %v909 = vunpack.c.l.b16 %v849
        %v910 = vunpack.c.l.b16 %v850
        %v911 = vunpack.c.l.b16 %v851
        %v912 = vunpack.c.l.b16 %v852
        %v913 = vunpack.c.l.b16 %v853
        %v914 = vunpack.c.l.b16 %v854
        %v915 = vunpack.c.l.b16 %v855
        %v916 = vunpack.c.l.b16 %v856
        %v917 = vunpack.c.l.b16 %v857
        %v918 = vunpack.c.l.b16 %v858
        %v919 = vunpack.c.l.b16 %v859
        %v920 = vunpack.c.l.b16 %v860
        %v921 = vunpack.c.l.b16 %v861
        %v922 = vpack.c.b16 %v907, %v906
        %v923 = vpack.c.b16 %v909, %v908
        %v924 = vpack.c.b16 %v911, %v910
        %v925 = vpack.c.b16 %v913, %v912
        %v926 = vpack.c.b16 %v915, %v914
        %v927 = vpack.c.b16 %v917, %v916
        %v928 = vpack.c.b16 %v919, %v918
        %v929 = vpack.c.b16 %v921, %v920
        %938 = vmatprep.subr.bf16.mxu0 0
        %939 = vmatpush1.bf16.msra.mxu0 %v922
        %940 = vmatprep.subr.bf16.mxu0 0
        %941 = vmatpush1.bf16.msra.mxu0 %v923
        %942 = vmatprep.subr.bf16.mxu0 0
        %943 = vmatpush1.bf16.msra.mxu0 %v924
        %944 = vmatprep.subr.bf16.mxu0 0
        %945 = vmatpush1.bf16.msra.mxu0 %v925
        %946 = vmatprep.subr.bf16.mxu0 0
        %947 = vmatpush1.bf16.msra.mxu0 %v926
        %948 = vmatprep.subr.bf16.mxu0 0
        %949 = vmatpush1.bf16.msra.mxu0 %v927
        %950 = vmatprep.subr.bf16.mxu0 0
        %951 = vmatpush1.bf16.msra.mxu0 %v928
        %952 = vmatprep.subr.bf16.mxu0 0
        %953 = vmatpush1.bf16.msra.mxu0 %v929
        %954 = vmatprep.subr.bf16.mxu0 0
        %955 = vmatpush1.bf16.msra.mxu0 0
        %956 = vmatprep.subr.bf16.mxu0 0
        %957 = vmatpush1.bf16.msra.mxu0 0
        %958 = vmatprep.subr.bf16.mxu0 0
        %959 = vmatpush1.bf16.msra.mxu0 0
        %960 = vmatprep.subr.bf16.mxu0 0
        %961 = vmatpush1.bf16.msra.mxu0 0
        %962 = vmatprep.subr.bf16.mxu0 0
        %963 = vmatpush1.bf16.msra.mxu0 0
        %964 = vmatprep.subr.bf16.mxu0 0
        %965 = vmatpush1.bf16.msra.mxu0 0
        %966 = vmatprep.subr.bf16.mxu0 0
        %967 = vmatpush1.bf16.msra.mxu0 0
        %968 = vmatprep.subr.bf16.mxu0 0
        %969 = vmatpush1.bf16.msra.mxu0 0
        %970 = vmatprep.mubr.bf16.mxu0 0
        %971 = vmatmul.mubr.bf16.gmra.mrb[0].mxu0 %v883
        %v972 = vpop.f32.mrb[0].mxu0
        %v973 = vadd.f32 %v888, %v972
        %v974 = vpop.f32.mrb[0].mxu0
        %v975 = vpop.f32.mrb[0].mxu0
        %v976 = vadd.f32 %v888, %v975
        %v977 = vpop.f32.mrb[0].mxu0
        %978 = vdwg.mxu0
        %v979 = vmax.f32 %v973, 0.0
        %v980 = vmax.f32 %v976, 0.0
        %v981 = vpack.c.bf16 %v980, %v979
        %v983 = vlaneseq
        %v984 = vshrl.u32 %v983, 7
        %v985 = vsub.s32 0, %v984
        %v986 = vrot.slane %v882, %v985
        %v1004 = vunpack.c.l.b16 %v865
        %v1005 = vunpack.c.l.b16 %v866
        %v1006 = vunpack.c.l.b16 %v867
        %v1007 = vunpack.c.l.b16 %v868
        %v1008 = vunpack.c.l.b16 %v869
        %v1009 = vunpack.c.l.b16 %v870
        %v1010 = vunpack.c.l.b16 %v871
        %v1011 = vunpack.c.l.b16 %v872
        %v1012 = vunpack.c.l.b16 %v873
        %v1013 = vunpack.c.l.b16 %v874
        %v1014 = vunpack.c.l.b16 %v875
        %v1015 = vunpack.c.l.b16 %v876
        %v1016 = vunpack.c.l.b16 %v877
        %v1017 = vunpack.c.l.b16 %v878
        %v1018 = vunpack.c.l.b16 %v879
        %v1019 = vunpack.c.l.b16 %v880
        %v1020 = vpack.c.b16 %v1005, %v1004
        %v1021 = vpack.c.b16 %v1007, %v1006
        %v1022 = vpack.c.b16 %v1009, %v1008
        %v1023 = vpack.c.b16 %v1011, %v1010
        %v1024 = vpack.c.b16 %v1013, %v1012
        %v1025 = vpack.c.b16 %v1015, %v1014
        %v1026 = vpack.c.b16 %v1017, %v1016
        %v1027 = vpack.c.b16 %v1019, %v1018
        %1036 = vmatprep.subr.bf16.mxu0 0
        %1037 = vmatpush1.bf16.msra.mxu0 %v1020
        %1038 = vmatprep.subr.bf16.mxu0 0
        %1039 = vmatpush1.bf16.msra.mxu0 %v1021
        %1040 = vmatprep.subr.bf16.mxu0 0
        %1041 = vmatpush1.bf16.msra.mxu0 %v1022
        %1042 = vmatprep.subr.bf16.mxu0 0
        %1043 = vmatpush1.bf16.msra.mxu0 %v1023
        %1044 = vmatprep.subr.bf16.mxu0 0
        %1045 = vmatpush1.bf16.msra.mxu0 %v1024
        %1046 = vmatprep.subr.bf16.mxu0 0
        %1047 = vmatpush1.bf16.msra.mxu0 %v1025
        %1048 = vmatprep.subr.bf16.mxu0 0
        %1049 = vmatpush1.bf16.msra.mxu0 %v1026
        %1050 = vmatprep.subr.bf16.mxu0 0
        %1051 = vmatpush1.bf16.msra.mxu0 %v1027
        %1052 = vmatprep.subr.bf16.mxu0 0
        %1053 = vmatpush1.bf16.msra.mxu0 0
        %1054 = vmatprep.subr.bf16.mxu0 0
        %1055 = vmatpush1.bf16.msra.mxu0 0
        %1056 = vmatprep.subr.bf16.mxu0 0
        %1057 = vmatpush1.bf16.msra.mxu0 0
        %1058 = vmatprep.subr.bf16.mxu0 0
        %1059 = vmatpush1.bf16.msra.mxu0 0
        %1060 = vmatprep.subr.bf16.mxu0 0
        %1061 = vmatpush1.bf16.msra.mxu0 0
        %1062 = vmatprep.subr.bf16.mxu0 0
        %1063 = vmatpush1.bf16.msra.mxu0 0
        %1064 = vmatprep.subr.bf16.mxu0 0
        %1065 = vmatpush1.bf16.msra.mxu0 0
        %1066 = vmatprep.subr.bf16.mxu0 0
        %1067 = vmatpush1.bf16.msra.mxu0 0
        %1068 = vmatprep.mubr.bf16.mxu0 0
        %1069 = vmatmul.mubr.bf16.gmra.mrb[0].mxu0 %v981
        %v1070 = vpop.f32.mrb[0].mxu0
        %v1071 = vadd.f32 %v986, %v1070
        %v1072 = vpop.f32.mrb[0].mxu0
        %v1073 = vpop.f32.mrb[0].mxu0
        %v1074 = vadd.f32 %v986, %v1073
        %v1075 = vpop.f32.mrb[0].mxu0
        %1076 = vdwg.mxu0
        %v1077 = vmax.f32 %v1071, 0.0
        %v1078 = vmax.f32 %v1074, 0.0
        %v1079 = vadd.f32 %v843, %v1077
        %v1080 = vadd.f32 %v844, %v1078
        %s1081 = scalar_lea.vmem [#allocation2], 192
        %v1082 = vld [vmem:[%s1081] sm:$0xf]
        %v1083 = vld [vmem:[%s1081 + $0x4] sm:$0xf]
        %v1084 = vld [vmem:[%s1081 + $0x8] sm:$0xf]
        %v1085 = vld [vmem:[%s1081 + $0xc] sm:$0xf]
        %v1086 = vld [vmem:[%s1081 + $0x10] sm:$0xf]
        %v1087 = vld [vmem:[%s1081 + $0x14] sm:$0xf]
        %v1088 = vld [vmem:[%s1081 + $0x18] sm:$0xf]
        %v1089 = vld [vmem:[%s1081 + $0x1c] sm:$0xf]
        %v1090 = vld [vmem:[%s1081 + $0x20] sm:$0xf]
        %v1091 = vld [vmem:[%s1081 + $0x24] sm:$0xf]
        %v1092 = vld [vmem:[%s1081 + $0x28] sm:$0xf]
        %v1093 = vld [vmem:[%s1081 + $0x2c] sm:$0xf]
        %v1094 = vld [vmem:[%s1081 + $0x30] sm:$0xf]
        %v1095 = vld [vmem:[%s1081 + $0x34] sm:$0xf]
        %v1096 = vld [vmem:[%s1081 + $0x38] sm:$0xf]
        %v1097 = vld [vmem:[%s1081 + $0x3c] sm:$0xf]
        %s1098 = scalar_lea.vmem %s4, 3
        %v1099 = vld [vmem:[%s1098] sm:$0x1]
        %s1100 = scalar_lea.vmem [#allocation5], 192
        %v1101 = vld [vmem:[%s1100] sm:$0xf]
        %v1102 = vld [vmem:[%s1100 + $0x4] sm:$0xf]
        %v1103 = vld [vmem:[%s1100 + $0x8] sm:$0xf]
        %v1104 = vld [vmem:[%s1100 + $0xc] sm:$0xf]
        %v1105 = vld [vmem:[%s1100 + $0x10] sm:$0xf]
        %v1106 = vld [vmem:[%s1100 + $0x14] sm:$0xf]
        %v1107 = vld [vmem:[%s1100 + $0x18] sm:$0xf]
        %v1108 = vld [vmem:[%s1100 + $0x1c] sm:$0xf]
        %v1109 = vld [vmem:[%s1100 + $0x20] sm:$0xf]
        %v1110 = vld [vmem:[%s1100 + $0x24] sm:$0xf]
        %v1111 = vld [vmem:[%s1100 + $0x28] sm:$0xf]
        %v1112 = vld [vmem:[%s1100 + $0x2c] sm:$0xf]
        %v1113 = vld [vmem:[%s1100 + $0x30] sm:$0xf]
        %v1114 = vld [vmem:[%s1100 + $0x34] sm:$0xf]
        %v1115 = vld [vmem:[%s1100 + $0x38] sm:$0xf]
        %v1116 = vld [vmem:[%s1100 + $0x3c] sm:$0xf]
        %s1117 = scalar_lea.vmem %s6, 3
        %v1118 = vld [vmem:[%s1117] sm:$0x1]
        %v1119 = vpack.c.bf16 %v1080, %v1079
        %v1121 = vlaneseq
        %v1122 = vshrl.u32 %v1121, 7
        %v1123 = vsub.s32 0, %v1122
        %v1124 = vrot.slane %v1099, %v1123
        %v1142 = vunpack.c.l.b16 %v1082
        %v1143 = vunpack.c.l.b16 %v1083
        %v1144 = vunpack.c.l.b16 %v1084
        %v1145 = vunpack.c.l.b16 %v1085
        %v1146 = vunpack.c.l.b16 %v1086
        %v1147 = vunpack.c.l.b16 %v1087
        %v1148 = vunpack.c.l.b16 %v1088
        %v1149 = vunpack.c.l.b16 %v1089
        %v1150 = vunpack.c.l.b16 %v1090
        %v1151 = vunpack.c.l.b16 %v1091
        %v1152 = vunpack.c.l.b16 %v1092
        %v1153 = vunpack.c.l.b16 %v1093
        %v1154 = vunpack.c.l.b16 %v1094
        %v1155 = vunpack.c.l.b16 %v1095
        %v1156 = vunpack.c.l.b16 %v1096
        %v1157 = vunpack.c.l.b16 %v1097
        %v1158 = vpack.c.b16 %v1143, %v1142
        %v1159 = vpack.c.b16 %v1145, %v1144
        %v1160 = vpack.c.b16 %v1147, %v1146
        %v1161 = vpack.c.b16 %v1149, %v1148
        %v1162 = vpack.c.b16 %v1151, %v1150
        %v1163 = vpack.c.b16 %v1153, %v1152
        %v1164 = vpack.c.b16 %v1155, %v1154
        %v1165 = vpack.c.b16 %v1157, %v1156
        %1174 = vmatprep.subr.bf16.mxu0 0
        %1175 = vmatpush1.bf16.msra.mxu0 %v1158
        %1176 = vmatprep.subr.bf16.mxu0 0
        %1177 = vmatpush1.bf16.msra.mxu0 %v1159
        %1178 = vmatprep.subr.bf16.mxu0 0
        %1179 = vmatpush1.bf16.msra.mxu0 %v1160
        %1180 = vmatprep.subr.bf16.mxu0 0
        %1181 = vmatpush1.bf16.msra.mxu0 %v1161
        %1182 = vmatprep.subr.bf16.mxu0 0
        %1183 = vmatpush1.bf16.msra.mxu0 %v1162
        %1184 = vmatprep.subr.bf16.mxu0 0
        %1185 = vmatpush1.bf16.msra.mxu0 %v1163
        %1186 = vmatprep.subr.bf16.mxu0 0
        %1187 = vmatpush1.bf16.msra.mxu0 %v1164
        %1188 = vmatprep.subr.bf16.mxu0 0
        %1189 = vmatpush1.bf16.msra.mxu0 %v1165
        %1190 = vmatprep.subr.bf16.mxu0 0
        %1191 = vmatpush1.bf16.msra.mxu0 0
        %1192 = vmatprep.subr.bf16.mxu0 0
        %1193 = vmatpush1.bf16.msra.mxu0 0
        %1194 = vmatprep.subr.bf16.mxu0 0
        %1195 = vmatpush1.bf16.msra.mxu0 0
        %1196 = vmatprep.subr.bf16.mxu0 0
        %1197 = vmatpush1.bf16.msra.mxu0 0
        %1198 = vmatprep.subr.bf16.mxu0 0
        %1199 = vmatpush1.bf16.msra.mxu0 0
        %1200 = vmatprep.subr.bf16.mxu0 0
        %1201 = vmatpush1.bf16.msra.mxu0 0
        %1202 = vmatprep.subr.bf16.mxu0 0
        %1203 = vmatpush1.bf16.msra.mxu0 0
        %1204 = vmatprep.subr.bf16.mxu0 0
        %1205 = vmatpush1.bf16.msra.mxu0 0
        %1206 = vmatprep.mubr.bf16.mxu0 0
        %1207 = vmatmul.mubr.bf16.gmra.mrb[0].mxu0 %v1119
        %v1208 = vpop.f32.mrb[0].mxu0
        %v1209 = vadd.f32 %v1124, %v1208
        %v1210 = vpop.f32.mrb[0].mxu0
        %v1211 = vpop.f32.mrb[0].mxu0
        %v1212 = vadd.f32 %v1124, %v1211
        %v1213 = vpop.f32.mrb[0].mxu0
        %1214 = vdwg.mxu0
        %v1215 = vmax.f32 %v1209, 0.0
        %v1216 = vmax.f32 %v1212, 0.0
        %v1217 = vpack.c.bf16 %v1216, %v1215
        %v1219 = vlaneseq
        %v1220 = vshrl.u32 %v1219, 7
        %v1221 = vsub.s32 0, %v1220
        %v1222 = vrot.slane %v1118, %v1221
        %v1240 = vunpack.c.l.b16 %v1101
        %v1241 = vunpack.c.l.b16 %v1102
        %v1242 = vunpack.c.l.b16 %v1103
        %v1243 = vunpack.c.l.b16 %v1104
        %v1244 = vunpack.c.l.b16 %v1105
        %v1245 = vunpack.c.l.b16 %v1106
        %v1246 = vunpack.c.l.b16 %v1107
        %v1247 = vunpack.c.l.b16 %v1108
        %v1248 = vunpack.c.l.b16 %v1109
        %v1249 = vunpack.c.l.b16 %v1110
        %v1250 = vunpack.c.l.b16 %v1111
        %v1251 = vunpack.c.l.b16 %v1112
        %v1252 = vunpack.c.l.b16 %v1113
        %v1253 = vunpack.c.l.b16 %v1114
        %v1254 = vunpack.c.l.b16 %v1115
        %v1255 = vunpack.c.l.b16 %v1116
        %v1256 = vpack.c.b16 %v1241, %v1240
        %v1257 = vpack.c.b16 %v1243, %v1242
        %v1258 = vpack.c.b16 %v1245, %v1244
        %v1259 = vpack.c.b16 %v1247, %v1246
        %v1260 = vpack.c.b16 %v1249, %v1248
        %v1261 = vpack.c.b16 %v1251, %v1250
        %v1262 = vpack.c.b16 %v1253, %v1252
        %v1263 = vpack.c.b16 %v1255, %v1254
        %1272 = vmatprep.subr.bf16.mxu0 0
        %1273 = vmatpush1.bf16.msra.mxu0 %v1256
        %1274 = vmatprep.subr.bf16.mxu0 0
        %1275 = vmatpush1.bf16.msra.mxu0 %v1257
        %1276 = vmatprep.subr.bf16.mxu0 0
        %1277 = vmatpush1.bf16.msra.mxu0 %v1258
        %1278 = vmatprep.subr.bf16.mxu0 0
        %1279 = vmatpush1.bf16.msra.mxu0 %v1259
        %1280 = vmatprep.subr.bf16.mxu0 0
        %1281 = vmatpush1.bf16.msra.mxu0 %v1260
        %1282 = vmatprep.subr.bf16.mxu0 0
        %1283 = vmatpush1.bf16.msra.mxu0 %v1261
        %1284 = vmatprep.subr.bf16.mxu0 0
        %1285 = vmatpush1.bf16.msra.mxu0 %v1262
        %1286 = vmatprep.subr.bf16.mxu0 0
        %1287 = vmatpush1.bf16.msra.mxu0 %v1263
        %1288 = vmatprep.subr.bf16.mxu0 0
        %1289 = vmatpush1.bf16.msra.mxu0 0
        %1290 = vmatprep.subr.bf16.mxu0 0
        %1291 = vmatpush1.bf16.msra.mxu0 0
        %1292 = vmatprep.subr.bf16.mxu0 0
        %1293 = vmatpush1.bf16.msra.mxu0 0
        %1294 = vmatprep.subr.bf16.mxu0 0
        %1295 = vmatpush1.bf16.msra.mxu0 0
        %1296 = vmatprep.subr.bf16.mxu0 0
        %1297 = vmatpush1.bf16.msra.mxu0 0
        %1298 = vmatprep.subr.bf16.mxu0 0
        %1299 = vmatpush1.bf16.msra.mxu0 0
        %1300 = vmatprep.subr.bf16.mxu0 0
        %1301 = vmatpush1.bf16.msra.mxu0 0
        %1302 = vmatprep.subr.bf16.mxu0 0
        %1303 = vmatpush1.bf16.msra.mxu0 0
        %1304 = vmatprep.mubr.bf16.mxu0 0
        %1305 = vmatmul.mubr.bf16.gmra.mrb[0].mxu0 %v1217
        %v1306 = vpop.f32.mrb[0].mxu0
        %v1307 = vadd.f32 %v1222, %v1306
        %v1308 = vpop.f32.mrb[0].mxu0
        %v1309 = vpop.f32.mrb[0].mxu0
        %v1310 = vadd.f32 %v1222, %v1309
        %v1311 = vpop.f32.mrb[0].mxu0
        %1312 = vdwg.mxu0
        %v1313 = vmax.f32 %v1307, 0.0
        %v1314 = vmax.f32 %v1310, 0.0
        %v1315 = vadd.f32 %v1079, %v1313
        %v1316 = vadd.f32 %v1080, %v1314
        %1317 = vst [vmem:[%s302] sm:$0xff] %v1315
        %1318 = vst [vmem:[%s302 + $0x8] sm:$0xff] %v1316
        %s1319 = sand.u32 %s183, 1
        %s1320 = scalar_lea.sflag [#allocation4], %s1319
        %s1321 = sand.u32 %s183, 1
        %s1322 = smul.addr %s1321, 16
        %s1323 = scalar_lea.vmem [#allocation7], %s1322
        // Predicated region
        $region57: #{tpu_custom_call.1} parent=47 // pred_check
          %p1324 = pneg %p193
        $region58: #{tpu_custom_call.1} parent=47 // pred_check_branch
          %1326 = sbr.rel (%p1324) target = $region60
        $region59: #{tpu_custom_call.1} parent=47 // pred_region
          %s1327 = smul.u32 2, %s23
          %s1329 = ssub.s32 256, 256
          %1330 = vsyncadd %s1320, %s1329
          %s1331 = smul.addr %s1327, 128
          %s1332 = scalar_lea.hbm %s7, %s1331
          %s1333 = sshll.u32 %s1323, 4
          %s1334 = int_to_ptr.vmem [resolvable:$true] %s1333
          %1339 = dma.vmem_to_hbm [thread:$0]  %s1334, 256, %s1332, %s1320, 128, 128, 8
        $region60: #{tpu_custom_call.1} parent=47 // pred_fallthru
          _
      $region48: #{tpu_custom_call.1} parent=5 // pred_fallthru
        _
      %p1340 = scmp.le.s32.totalorder 2, %s18
      // Predicated region
      $region61: #{tpu_custom_call.1} parent=5 // pred_check
        %p1341 = pneg %p1340
      $region62: #{tpu_custom_call.1} parent=5 // pred_check_branch
        %1343 = sbr.rel (%p1341) target = $region64
      $region63: #{tpu_custom_call.1} parent=5 // pred_region
        %s1344 = ssub.s32 %s18, 2
        // Predicated region
        $region65: #{tpu_custom_call.1} parent=63 // pred_check
          %p1345 = pneg %p199
        $region66: #{tpu_custom_call.1} parent=63 // pred_check_branch
          %1347 = sbr.rel (%p1345) target = $region68
        $region67: #{tpu_custom_call.1} parent=63 // pred_region
          %s1348 = sand.u32 %s184, 1
          %s1349 = scalar_lea.sflag [#allocation4], %s1348
          %s1350 = sand.u32 %s184, 1
          %s1351 = smul.addr %s1350, 16
          %s1352 = scalar_lea.vmem [#allocation7], %s1351
          %1353 = dma.done %s1349, 256
        $region68: #{tpu_custom_call.1} parent=63 // pred_fallthru
          _
      $region64: #{tpu_custom_call.1} parent=5 // pred_fallthru
        _
    $region6: #{tpu_custom_call.1} parent=1 // loop_footer
      %s22 = sadd.s32 1, %s18
    $region7: #{tpu_custom_call.1} parent=1 // loop_footer_branch
      %17 = sbr.rel target = $region3
    $region8: #{tpu_custom_call.1} parent=1 // loop_exit
      _
    %1354 = vsyncpa [#allocation3], 1
    %s1355 = scalar_lea.sflag [#allocation3], 1
    %1356 = vsyncpa %s1355, 1
    %1357 = vsyncpa [#allocation6], 1
    %1358 = vsyncpa [#allocation4], 1
    %s1359 = scalar_lea.sflag [#allocation4], 1
    %1360 = vsyncpa %s1359, 1

</llo_original>
